<compile_context>
chip_gen: v7x
topology: tpu7x:2x2x1
jax: 0.10.0
libtpu: 0.0.40
codegen_flags: <defaults>
</compile_context>

<pallas_src>
import math
import functools

import jax
import jax.numpy as jnp
from jax.experimental import pallas as pl
from jax.experimental.pallas import tpu as pltpu


def _interacte_gru_kernel(x_ref, c_ref, h0_ref, wx_ref, wc_ref, b_ref,
                          whzr_ref, whh_ref, wout_ref, bout_ref,
                          out_ref, hs_ref, *, seq_len, batch, hidden):
    # x_ref/c_ref: (T*B, D_in) time-major flattened inputs.
    # One fused MXU matmul for every timestep's x- and c-dependent gate inputs.
    pre = (jnp.dot(x_ref[...], wx_ref[...], preferred_element_type=jnp.float32)
           + jnp.dot(c_ref[...], wc_ref[...], preferred_element_type=jnp.float32)
           + b_ref[...])                                   # (T*B, 3H): [z | r | h~]

    h = h0_ref[...].astype(jnp.float32)                    # (B, H)
    hs_steps = []
    for t in range(seq_len):                               # sequential recurrence
        pre_t = pre[t * batch:(t + 1) * batch, :]          # (B, 3H), static slice
        # Fused z/r recurrent matmul: h @ [Whz | Whr] -> (B, 2H)
        hzr = jnp.dot(h, whzr_ref[...], preferred_element_type=jnp.float32)
        z = jax.nn.sigmoid(pre_t[:, 0:hidden] + hzr[:, 0:hidden])
        r = jax.nn.sigmoid(pre_t[:, hidden:2 * hidden] + hzr[:, hidden:2 * hidden])
        h_tilde = jnp.tanh(pre_t[:, 2 * hidden:3 * hidden]
                           + jnp.dot(r * h, whh_ref[...],
                                     preferred_element_type=jnp.float32))
        h = (1.0 - z) * h + z * h_tilde
        hs_steps.append(h)

    # Single dense store of the whole hidden-state history (T*B, H).
    hs_ref[...] = jnp.concatenate(hs_steps, axis=0).astype(hs_ref.dtype)

    # output = ReLU(Linear(h_T)); the second F.relu in the PyTorch code is a no-op.
    out = jnp.dot(h, wout_ref[...], preferred_element_type=jnp.float32) + bout_ref[...]
    out_ref[...] = jnp.maximum(out, 0.0).astype(out_ref.dtype)


def interacte_gru_pallas(x, c, h0,
                         w_xr, w_hr, w_cr,
                         w_xz, w_hz, w_cz,
                         w_xh, w_hh, w_ch,
                         b_r, b_z, b_h,
                         w_out, b_out):
    B, T, D_in = x.shape
    H = w_xz.shape[1]
    O = w_out.shape[1]

    # Wrapper-side layout plumbing (trace-time, free): fuse gate weights/biases.
    wx = jnp.concatenate([w_xz, w_xr, w_xh], axis=1)        # (D_in, 3H)
    wc = jnp.concatenate([w_cz, w_cr, w_ch], axis=1)        # (D_in, 3H)
    b = jnp.concatenate([b_z, b_r, b_h])[None, :]           # (1, 3H)
    whzr = jnp.concatenate([w_hz, w_hr], axis=1)             # (H, 2H)
    bout = b_out[None, :]                                    # (1, O)

    # Time-major flattening so each timestep is a contiguous sublane block.
    x_flat = jnp.transpose(x, (1, 0, 2)).reshape(T * B, D_in)
    c_flat = jnp.transpose(c, (1, 0, 2)).reshape(T * B, D_in)

    kernel = functools.partial(_interacte_gru_kernel,
                               seq_len=T, batch=B, hidden=H)

    out, hs_flat = pl.pallas_call(
        kernel,
        out_shape=(jax.ShapeDtypeStruct((B, O), x.dtype),
                   jax.ShapeDtypeStruct((T * B, H), x.dtype)),
        grid=(1,),                                           # single invocation
        in_specs=[
            pl.BlockSpec((T * B, D_in), lambda i: (0, 0)),   # x (time-major flat)
            pl.BlockSpec((T * B, D_in), lambda i: (0, 0)),   # c (time-major flat)
            pl.BlockSpec((B, H),        lambda i: (0, 0)),   # h0
            pl.BlockSpec((D_in, 3 * H), lambda i: (0, 0)),   # [Wxz|Wxr|Wxh]
            pl.BlockSpec((D_in, 3 * H), lambda i: (0, 0)),   # [Wcz|Wcr|Wch]
            pl.BlockSpec((1, 3 * H),    lambda i: (0, 0)),   # [bz|br|bh]
            pl.BlockSpec((H, 2 * H),    lambda i: (0, 0)),   # [Whz|Whr]
            pl.BlockSpec((H, H),        lambda i: (0, 0)),   # Whh
            pl.BlockSpec((H, O),        lambda i: (0, 0)),   # W_out
            pl.BlockSpec((1, O),        lambda i: (0, 0)),   # b_out
        ],
        out_specs=(pl.BlockSpec((B, O),     lambda i: (0, 0)),
                   pl.BlockSpec((T * B, H), lambda i: (0, 0))),
        compiler_params=pltpu.CompilerParams(
            dimension_semantics=("arbitrary",)),
    )(x_flat, c_flat, h0, wx, wc, b, whzr, w_hh, w_out, bout)

    hs = hs_flat.reshape(T, B, H).transpose(1, 0, 2)         # (B, T, H)
    return out, hs


def interacte_gru_ref(x, c, h0,
                      w_xr, w_hr, w_cr,
                      w_xz, w_hz, w_cz,
                      w_xh, w_hh, w_ch,
                      b_r, b_z, b_h,
                      w_out, b_out):
    """Pure-JAX reference that mirrors the PyTorch forward exactly."""
    B, T, _ = x.shape
    h = h0
    hs = []
    for t in range(T):
        xt = x[:, t, :]
        ct = c[:, t, :]
        z = jax.nn.sigmoid(xt @ w_xz + h @ w_hz + ct @ w_cz + b_z)
        r = jax.nn.sigmoid(xt @ w_xr + h @ w_hr + ct @ w_cr + b_r)
        h_tilde = jnp.tanh(xt @ w_xh + (r * h) @ w_hh + ct @ w_ch + b_h)
        h = (1.0 - z) * h + z * h_tilde
        hs.append(h)
    hs = jnp.stack(hs, axis=1)                               # (B, T, H)
    out = jnp.maximum(h @ w_out + b_out, 0.0)                # ReLU(Linear(h)); 2nd relu no-op
    return out, hs


if __name__ == "__main__":
    # Small shapes consistent with the module: batch=2, seq=8,
    # input_size=32, hidden_size=32, output_size=16.
    B, T, D_IN, HIDDEN, OUT = 2, 8, 32, 32, 16

    key = jax.random.PRNGKey(0)
    keys = jax.random.split(key, 18)
    stdv = 1.0 / math.sqrt(HIDDEN)

    def u(k, shape):
        return jax.random.uniform(k, shape, minval=-stdv, maxval=stdv,
                                  dtype=jnp.float32)

    x = jax.random.normal(keys[0], (B, T, D_IN), dtype=jnp.float32)
    c = jax.random.normal(keys[1], (B, T, D_IN), dtype=jnp.float32)
    h0 = jax.random.uniform(keys[2], (B, HIDDEN), dtype=jnp.float32)  # torch.rand analogue

    w_xr = u(keys[3], (D_IN, HIDDEN));  w_hr = u(keys[4], (HIDDEN, HIDDEN))
    w_cr = u(keys[5], (D_IN, HIDDEN))
    w_xz = u(keys[6], (D_IN, HIDDEN));  w_hz = u(keys[7], (HIDDEN, HIDDEN))
    w_cz = u(keys[8], (D_IN, HIDDEN))
    w_xh = u(keys[9], (D_IN, HIDDEN));  w_hh = u(keys[10], (HIDDEN, HIDDEN))
    w_ch = u(keys[11], (D_IN, HIDDEN))
    b_r = u(keys[12], (HIDDEN,)); b_z = u(keys[13], (HIDDEN,)); b_h = u(keys[14], (HIDDEN,))
    w_out = u(keys[15], (HIDDEN, OUT)); b_out = u(keys[16], (OUT,))

    args = (x, c, h0,
            w_xr, w_hr, w_cr,
            w_xz, w_hz, w_cz,
            w_xh, w_hh, w_ch,
            b_r, b_z, b_h,
            w_out, b_out)

    out, hs = interacte_gru_pallas(*args)
    out, hs = jax.block_until_ready((out, hs))

    out_ref, hs_ref = interacte_gru_ref(*args)

    assert out.shape == (B, OUT)
    assert hs.shape == (B, T, HIDDEN)
    assert jnp.allclose(out, out_ref, atol=1e-4, rtol=1e-4), "output mismatch vs JAX reference"
    assert jnp.allclose(hs, hs_ref, atol=1e-4, rtol=1e-4), "hidden-state mismatch vs JAX reference"

    print("KERNEL_OK")
</pallas_src>

<mosaic_0001>
module attributes {stable_mosaic.version = 11 : i64} {
  func.func @_interacte_gru_kernel(%arg0: i32, %arg1: memref<16x32xf32, #tpu.memory_space<vmem>>, %arg2: memref<16x32xf32, #tpu.memory_space<vmem>>, %arg3: memref<2x32xf32, #tpu.memory_space<vmem>>, %arg4: memref<32x96xf32, #tpu.memory_space<vmem>>, %arg5: memref<32x96xf32, #tpu.memory_space<vmem>>, %arg6: memref<1x96xf32, #tpu.memory_space<vmem>>, %arg7: memref<32x64xf32, #tpu.memory_space<vmem>>, %arg8: memref<32x32xf32, #tpu.memory_space<vmem>>, %arg9: memref<32x16xf32, #tpu.memory_space<vmem>>, %arg10: memref<1x16xf32, #tpu.memory_space<vmem>>, %arg11: memref<2x16xf32, #tpu.memory_space<vmem>>, %arg12: memref<16x32xf32, #tpu.memory_space<vmem>>) attributes {dimension_semantics = [#tpu.dimension_semantics<arbitrary>], iteration_bounds = array<i64: 1>, scalar_prefetch = 0 : i64, scratch_operands = 0 : i64, tpu.core_type = #tpu.core_type<tc>, window_params = [{pipeline_mode = #tpu.pipeline_mode<synchronous>, transform_indices = @transform_0, window_bounds = array<i64: 16, 32>}, {pipeline_mode = #tpu.pipeline_mode<synchronous>, transform_indices = @transform_1, window_bounds = array<i64: 16, 32>}, {pipeline_mode = #tpu.pipeline_mode<synchronous>, transform_indices = @transform_2, window_bounds = array<i64: 2, 32>}, {pipeline_mode = #tpu.pipeline_mode<synchronous>, transform_indices = @transform_3, window_bounds = array<i64: 32, 96>}, {pipeline_mode = #tpu.pipeline_mode<synchronous>, transform_indices = @transform_4, window_bounds = array<i64: 32, 96>}, {pipeline_mode = #tpu.pipeline_mode<synchronous>, transform_indices = @transform_5, window_bounds = array<i64: 1, 96>}, {pipeline_mode = #tpu.pipeline_mode<synchronous>, transform_indices = @transform_6, window_bounds = array<i64: 32, 64>}, {pipeline_mode = #tpu.pipeline_mode<synchronous>, transform_indices = @transform_7, window_bounds = array<i64: 32, 32>}, {pipeline_mode = #tpu.pipeline_mode<synchronous>, transform_indices = @transform_8, window_bounds = array<i64: 32, 16>}, {pipeline_mode = #tpu.pipeline_mode<synchronous>, transform_indices = @transform_9, window_bounds = array<i64: 1, 16>}, {pipeline_mode = #tpu.pipeline_mode<synchronous>, transform_indices = @transform_10, window_bounds = array<i64: 2, 16>}, {pipeline_mode = #tpu.pipeline_mode<synchronous>, transform_indices = @transform_11, window_bounds = array<i64: 16, 32>}]} {
    %c0 = arith.constant 0 : index
    %c0_0 = arith.constant 0 : index
    %0 = vector.load %arg1[%c0, %c0_0] : memref<16x32xf32, #tpu.memory_space<vmem>>, vector<16x32xf32>
    %c0_1 = arith.constant 0 : index
    %c0_2 = arith.constant 0 : index
    %1 = vector.load %arg4[%c0_1, %c0_2] : memref<32x96xf32, #tpu.memory_space<vmem>>, vector<32x96xf32>
    %cst = arith.constant dense<0.000000e+00> : vector<16x96xf32>
    %2 = tpu.matmul %0, %1, %cst {dimension_numbers = #tpu.dot_dimension_numbers<[1], [0], [0], [1], [0, 0, 1, 1], [], []>} : vector<16x32xf32>, vector<32x96xf32>, vector<16x96xf32> -> vector<16x96xf32>
    %c0_3 = arith.constant 0 : index
    %c0_4 = arith.constant 0 : index
    %3 = vector.load %arg2[%c0_3, %c0_4] : memref<16x32xf32, #tpu.memory_space<vmem>>, vector<16x32xf32>
    %c0_5 = arith.constant 0 : index
    %c0_6 = arith.constant 0 : index
    %4 = vector.load %arg5[%c0_5, %c0_6] : memref<32x96xf32, #tpu.memory_space<vmem>>, vector<32x96xf32>
    %cst_7 = arith.constant dense<0.000000e+00> : vector<16x96xf32>
    %5 = tpu.matmul %3, %4, %cst_7 {dimension_numbers = #tpu.dot_dimension_numbers<[1], [0], [0], [1], [0, 0, 1, 1], [], []>} : vector<16x32xf32>, vector<32x96xf32>, vector<16x96xf32> -> vector<16x96xf32>
    %6 = arith.addf %2, %5 : vector<16x96xf32>
    %c0_8 = arith.constant 0 : index
    %c0_9 = arith.constant 0 : index
    %7 = vector.load %arg6[%c0_8, %c0_9] : memref<1x96xf32, #tpu.memory_space<vmem>>, vector<1x96xf32>
    %8 = vector.broadcast %7 : vector<1x96xf32> to vector<16x96xf32>
    %9 = arith.addf %6, %8 : vector<16x96xf32>
    %c0_10 = arith.constant 0 : index
    %c0_11 = arith.constant 0 : index
    %10 = vector.load %arg3[%c0_10, %c0_11] : memref<2x32xf32, #tpu.memory_space<vmem>>, vector<2x32xf32>
    %11 = vector.extract_strided_slice %9 {offsets = [0, 0], sizes = [2, 96], strides = [1, 1]} : vector<16x96xf32> to vector<2x96xf32>
    %c0_12 = arith.constant 0 : index
    %c0_13 = arith.constant 0 : index
    %12 = vector.load %arg7[%c0_12, %c0_13] : memref<32x64xf32, #tpu.memory_space<vmem>>, vector<32x64xf32>
    %cst_14 = arith.constant dense<0.000000e+00> : vector<2x64xf32>
    %13 = tpu.matmul %10, %12, %cst_14 {dimension_numbers = #tpu.dot_dimension_numbers<[1], [0], [0], [1], [0, 0, 1, 1], [], []>} : vector<2x32xf32>, vector<32x64xf32>, vector<2x64xf32> -> vector<2x64xf32>
    %14 = vector.extract_strided_slice %11 {offsets = [0, 0], sizes = [2, 32], strides = [1, 1]} : vector<2x96xf32> to vector<2x32xf32>
    %15 = vector.extract_strided_slice %13 {offsets = [0, 0], sizes = [2, 32], strides = [1, 1]} : vector<2x64xf32> to vector<2x32xf32>
    %16 = arith.addf %14, %15 : vector<2x32xf32>
    %17 = arith.negf %16 : vector<2x32xf32>
    %18 = math.exp %17 : vector<2x32xf32>
    %cst_15 = arith.constant 1.000000e+00 : f32
    %19 = vector.broadcast %cst_15 : f32 to vector<2x32xf32>
    %20 = arith.addf %19, %18 : vector<2x32xf32>
    %21 = arith.divf %19, %20 : vector<2x32xf32>
    %22 = vector.extract_strided_slice %11 {offsets = [0, 32], sizes = [2, 32], strides = [1, 1]} : vector<2x96xf32> to vector<2x32xf32>
    %23 = vector.extract_strided_slice %13 {offsets = [0, 32], sizes = [2, 32], strides = [1, 1]} : vector<2x64xf32> to vector<2x32xf32>
    %24 = arith.addf %22, %23 : vector<2x32xf32>
    %25 = arith.negf %24 : vector<2x32xf32>
    %26 = math.exp %25 : vector<2x32xf32>
    %cst_16 = arith.constant 1.000000e+00 : f32
    %27 = vector.broadcast %cst_16 : f32 to vector<2x32xf32>
    %28 = arith.addf %27, %26 : vector<2x32xf32>
    %29 = arith.divf %27, %28 : vector<2x32xf32>
    %30 = vector.extract_strided_slice %11 {offsets = [0, 64], sizes = [2, 32], strides = [1, 1]} : vector<2x96xf32> to vector<2x32xf32>
    %31 = arith.mulf %29, %10 : vector<2x32xf32>
    %c0_17 = arith.constant 0 : index
    %c0_18 = arith.constant 0 : index
    %32 = vector.load %arg8[%c0_17, %c0_18] : memref<32x32xf32, #tpu.memory_space<vmem>>, vector<32x32xf32>
    %cst_19 = arith.constant dense<0.000000e+00> : vector<2x32xf32>
    %33 = tpu.matmul %31, %32, %cst_19 {dimension_numbers = #tpu.dot_dimension_numbers<[1], [0], [0], [1], [0, 0, 1, 1], [], []>} : vector<2x32xf32>, vector<32x32xf32>, vector<2x32xf32> -> vector<2x32xf32>
    %34 = arith.addf %30, %33 : vector<2x32xf32>
    %35 = math.tanh %34 : vector<2x32xf32>
    %cst_20 = arith.constant 1.000000e+00 : f32
    %36 = vector.broadcast %cst_20 : f32 to vector<2x32xf32>
    %37 = arith.subf %36, %21 : vector<2x32xf32>
    %38 = arith.mulf %37, %10 : vector<2x32xf32>
    %39 = arith.mulf %21, %35 : vector<2x32xf32>
    %40 = arith.addf %38, %39 : vector<2x32xf32>
    %41 = vector.extract_strided_slice %9 {offsets = [2, 0], sizes = [2, 96], strides = [1, 1]} : vector<16x96xf32> to vector<2x96xf32>
    %c0_21 = arith.constant 0 : index
    %c0_22 = arith.constant 0 : index
    %42 = vector.load %arg7[%c0_21, %c0_22] : memref<32x64xf32, #tpu.memory_space<vmem>>, vector<32x64xf32>
    %cst_23 = arith.constant dense<0.000000e+00> : vector<2x64xf32>
    %43 = tpu.matmul %40, %42, %cst_23 {dimension_numbers = #tpu.dot_dimension_numbers<[1], [0], [0], [1], [0, 0, 1, 1], [], []>} : vector<2x32xf32>, vector<32x64xf32>, vector<2x64xf32> -> vector<2x64xf32>
    %44 = vector.extract_strided_slice %41 {offsets = [0, 0], sizes = [2, 32], strides = [1, 1]} : vector<2x96xf32> to vector<2x32xf32>
    %45 = vector.extract_strided_slice %43 {offsets = [0, 0], sizes = [2, 32], strides = [1, 1]} : vector<2x64xf32> to vector<2x32xf32>
    %46 = arith.addf %44, %45 : vector<2x32xf32>
    %47 = arith.negf %46 : vector<2x32xf32>
    %48 = math.exp %47 : vector<2x32xf32>
    %cst_24 = arith.constant 1.000000e+00 : f32
    %49 = vector.broadcast %cst_24 : f32 to vector<2x32xf32>
    %50 = arith.addf %49, %48 : vector<2x32xf32>
    %51 = arith.divf %49, %50 : vector<2x32xf32>
    %52 = vector.extract_strided_slice %41 {offsets = [0, 32], sizes = [2, 32], strides = [1, 1]} : vector<2x96xf32> to vector<2x32xf32>
    %53 = vector.extract_strided_slice %43 {offsets = [0, 32], sizes = [2, 32], strides = [1, 1]} : vector<2x64xf32> to vector<2x32xf32>
    %54 = arith.addf %52, %53 : vector<2x32xf32>
    %55 = arith.negf %54 : vector<2x32xf32>
    %56 = math.exp %55 : vector<2x32xf32>
    %cst_25 = arith.constant 1.000000e+00 : f32
    %57 = vector.broadcast %cst_25 : f32 to vector<2x32xf32>
    %58 = arith.addf %57, %56 : vector<2x32xf32>
    %59 = arith.divf %57, %58 : vector<2x32xf32>
    %60 = vector.extract_strided_slice %41 {offsets = [0, 64], sizes = [2, 32], strides = [1, 1]} : vector<2x96xf32> to vector<2x32xf32>
    %61 = arith.mulf %59, %40 : vector<2x32xf32>
    %c0_26 = arith.constant 0 : index
    %c0_27 = arith.constant 0 : index
    %62 = vector.load %arg8[%c0_26, %c0_27] : memref<32x32xf32, #tpu.memory_space<vmem>>, vector<32x32xf32>
    %cst_28 = arith.constant dense<0.000000e+00> : vector<2x32xf32>
    %63 = tpu.matmul %61, %62, %cst_28 {dimension_numbers = #tpu.dot_dimension_numbers<[1], [0], [0], [1], [0, 0, 1, 1], [], []>} : vector<2x32xf32>, vector<32x32xf32>, vector<2x32xf32> -> vector<2x32xf32>
    %64 = arith.addf %60, %63 : vector<2x32xf32>
    %65 = math.tanh %64 : vector<2x32xf32>
    %cst_29 = arith.constant 1.000000e+00 : f32
    %66 = vector.broadcast %cst_29 : f32 to vector<2x32xf32>
    %67 = arith.subf %66, %51 : vector<2x32xf32>
    %68 = arith.mulf %67, %40 : vector<2x32xf32>
    %69 = arith.mulf %51, %65 : vector<2x32xf32>
    %70 = arith.addf %68, %69 : vector<2x32xf32>
    %71 = vector.extract_strided_slice %9 {offsets = [4, 0], sizes = [2, 96], strides = [1, 1]} : vector<16x96xf32> to vector<2x96xf32>
    %c0_30 = arith.constant 0 : index
    %c0_31 = arith.constant 0 : index
    %72 = vector.load %arg7[%c0_30, %c0_31] : memref<32x64xf32, #tpu.memory_space<vmem>>, vector<32x64xf32>
    %cst_32 = arith.constant dense<0.000000e+00> : vector<2x64xf32>
    %73 = tpu.matmul %70, %72, %cst_32 {dimension_numbers = #tpu.dot_dimension_numbers<[1], [0], [0], [1], [0, 0, 1, 1], [], []>} : vector<2x32xf32>, vector<32x64xf32>, vector<2x64xf32> -> vector<2x64xf32>
    %74 = vector.extract_strided_slice %71 {offsets = [0, 0], sizes = [2, 32], strides = [1, 1]} : vector<2x96xf32> to vector<2x32xf32>
    %75 = vector.extract_strided_slice %73 {offsets = [0, 0], sizes = [2, 32], strides = [1, 1]} : vector<2x64xf32> to vector<2x32xf32>
    %76 = arith.addf %74, %75 : vector<2x32xf32>
    %77 = arith.negf %76 : vector<2x32xf32>
    %78 = math.exp %77 : vector<2x32xf32>
    %cst_33 = arith.constant 1.000000e+00 : f32
    %79 = vector.broadcast %cst_33 : f32 to vector<2x32xf32>
    %80 = arith.addf %79, %78 : vector<2x32xf32>
    %81 = arith.divf %79, %80 : vector<2x32xf32>
    %82 = vector.extract_strided_slice %71 {offsets = [0, 32], sizes = [2, 32], strides = [1, 1]} : vector<2x96xf32> to vector<2x32xf32>
    %83 = vector.extract_strided_slice %73 {offsets = [0, 32], sizes = [2, 32], strides = [1, 1]} : vector<2x64xf32> to vector<2x32xf32>
    %84 = arith.addf %82, %83 : vector<2x32xf32>
    %85 = arith.negf %84 : vector<2x32xf32>
    %86 = math.exp %85 : vector<2x32xf32>
    %cst_34 = arith.constant 1.000000e+00 : f32
    %87 = vector.broadcast %cst_34 : f32 to vector<2x32xf32>
    %88 = arith.addf %87, %86 : vector<2x32xf32>
    %89 = arith.divf %87, %88 : vector<2x32xf32>
    %90 = vector.extract_strided_slice %71 {offsets = [0, 64], sizes = [2, 32], strides = [1, 1]} : vector<2x96xf32> to vector<2x32xf32>
    %91 = arith.mulf %89, %70 : vector<2x32xf32>
    %c0_35 = arith.constant 0 : index
    %c0_36 = arith.constant 0 : index
    %92 = vector.load %arg8[%c0_35, %c0_36] : memref<32x32xf32, #tpu.memory_space<vmem>>, vector<32x32xf32>
    %cst_37 = arith.constant dense<0.000000e+00> : vector<2x32xf32>
    %93 = tpu.matmul %91, %92, %cst_37 {dimension_numbers = #tpu.dot_dimension_numbers<[1], [0], [0], [1], [0, 0, 1, 1], [], []>} : vector<2x32xf32>, vector<32x32xf32>, vector<2x32xf32> -> vector<2x32xf32>
    %94 = arith.addf %90, %93 : vector<2x32xf32>
    %95 = math.tanh %94 : vector<2x32xf32>
    %cst_38 = arith.constant 1.000000e+00 : f32
    %96 = vector.broadcast %cst_38 : f32 to vector<2x32xf32>
    %97 = arith.subf %96, %81 : vector<2x32xf32>
    %98 = arith.mulf %97, %70 : vector<2x32xf32>
    %99 = arith.mulf %81, %95 : vector<2x32xf32>
    %100 = arith.addf %98, %99 : vector<2x32xf32>
    %101 = vector.extract_strided_slice %9 {offsets = [6, 0], sizes = [2, 96], strides = [1, 1]} : vector<16x96xf32> to vector<2x96xf32>
    %c0_39 = arith.constant 0 : index
    %c0_40 = arith.constant 0 : index
    %102 = vector.load %arg7[%c0_39, %c0_40] : memref<32x64xf32, #tpu.memory_space<vmem>>, vector<32x64xf32>
    %cst_41 = arith.constant dense<0.000000e+00> : vector<2x64xf32>
    %103 = tpu.matmul %100, %102, %cst_41 {dimension_numbers = #tpu.dot_dimension_numbers<[1], [0], [0], [1], [0, 0, 1, 1], [], []>} : vector<2x32xf32>, vector<32x64xf32>, vector<2x64xf32> -> vector<2x64xf32>
    %104 = vector.extract_strided_slice %101 {offsets = [0, 0], sizes = [2, 32], strides = [1, 1]} : vector<2x96xf32> to vector<2x32xf32>
    %105 = vector.extract_strided_slice %103 {offsets = [0, 0], sizes = [2, 32], strides = [1, 1]} : vector<2x64xf32> to vector<2x32xf32>
    %106 = arith.addf %104, %105 : vector<2x32xf32>
    %107 = arith.negf %106 : vector<2x32xf32>
    %108 = math.exp %107 : vector<2x32xf32>
    %cst_42 = arith.constant 1.000000e+00 : f32
    %109 = vector.broadcast %cst_42 : f32 to vector<2x32xf32>
    %110 = arith.addf %109, %108 : vector<2x32xf32>
    %111 = arith.divf %109, %110 : vector<2x32xf32>
    %112 = vector.extract_strided_slice %101 {offsets = [0, 32], sizes = [2, 32], strides = [1, 1]} : vector<2x96xf32> to vector<2x32xf32>
    %113 = vector.extract_strided_slice %103 {offsets = [0, 32], sizes = [2, 32], strides = [1, 1]} : vector<2x64xf32> to vector<2x32xf32>
    %114 = arith.addf %112, %113 : vector<2x32xf32>
    %115 = arith.negf %114 : vector<2x32xf32>
    %116 = math.exp %115 : vector<2x32xf32>
    %cst_43 = arith.constant 1.000000e+00 : f32
    %117 = vector.broadcast %cst_43 : f32 to vector<2x32xf32>
    %118 = arith.addf %117, %116 : vector<2x32xf32>
    %119 = arith.divf %117, %118 : vector<2x32xf32>
    %120 = vector.extract_strided_slice %101 {offsets = [0, 64], sizes = [2, 32], strides = [1, 1]} : vector<2x96xf32> to vector<2x32xf32>
    %121 = arith.mulf %119, %100 : vector<2x32xf32>
    %c0_44 = arith.constant 0 : index
    %c0_45 = arith.constant 0 : index
    %122 = vector.load %arg8[%c0_44, %c0_45] : memref<32x32xf32, #tpu.memory_space<vmem>>, vector<32x32xf32>
    %cst_46 = arith.constant dense<0.000000e+00> : vector<2x32xf32>
    %123 = tpu.matmul %121, %122, %cst_46 {dimension_numbers = #tpu.dot_dimension_numbers<[1], [0], [0], [1], [0, 0, 1, 1], [], []>} : vector<2x32xf32>, vector<32x32xf32>, vector<2x32xf32> -> vector<2x32xf32>
    %124 = arith.addf %120, %123 : vector<2x32xf32>
    %125 = math.tanh %124 : vector<2x32xf32>
    %cst_47 = arith.constant 1.000000e+00 : f32
    %126 = vector.broadcast %cst_47 : f32 to vector<2x32xf32>
    %127 = arith.subf %126, %111 : vector<2x32xf32>
    %128 = arith.mulf %127, %100 : vector<2x32xf32>
    %129 = arith.mulf %111, %125 : vector<2x32xf32>
    %130 = arith.addf %128, %129 : vector<2x32xf32>
    %131 = vector.extract_strided_slice %9 {offsets = [8, 0], sizes = [2, 96], strides = [1, 1]} : vector<16x96xf32> to vector<2x96xf32>
    %c0_48 = arith.constant 0 : index
    %c0_49 = arith.constant 0 : index
    %132 = vector.load %arg7[%c0_48, %c0_49] : memref<32x64xf32, #tpu.memory_space<vmem>>, vector<32x64xf32>
    %cst_50 = arith.constant dense<0.000000e+00> : vector<2x64xf32>
    %133 = tpu.matmul %130, %132, %cst_50 {dimension_numbers = #tpu.dot_dimension_numbers<[1], [0], [0], [1], [0, 0, 1, 1], [], []>} : vector<2x32xf32>, vector<32x64xf32>, vector<2x64xf32> -> vector<2x64xf32>
    %134 = vector.extract_strided_slice %131 {offsets = [0, 0], sizes = [2, 32], strides = [1, 1]} : vector<2x96xf32> to vector<2x32xf32>
    %135 = vector.extract_strided_slice %133 {offsets = [0, 0], sizes = [2, 32], strides = [1, 1]} : vector<2x64xf32> to vector<2x32xf32>
    %136 = arith.addf %134, %135 : vector<2x32xf32>
    %137 = arith.negf %136 : vector<2x32xf32>
    %138 = math.exp %137 : vector<2x32xf32>
    %cst_51 = arith.constant 1.000000e+00 : f32
    %139 = vector.broadcast %cst_51 : f32 to vector<2x32xf32>
    %140 = arith.addf %139, %138 : vector<2x32xf32>
    %141 = arith.divf %139, %140 : vector<2x32xf32>
    %142 = vector.extract_strided_slice %131 {offsets = [0, 32], sizes = [2, 32], strides = [1, 1]} : vector<2x96xf32> to vector<2x32xf32>
    %143 = vector.extract_strided_slice %133 {offsets = [0, 32], sizes = [2, 32], strides = [1, 1]} : vector<2x64xf32> to vector<2x32xf32>
    %144 = arith.addf %142, %143 : vector<2x32xf32>
    %145 = arith.negf %144 : vector<2x32xf32>
    %146 = math.exp %145 : vector<2x32xf32>
    %cst_52 = arith.constant 1.000000e+00 : f32
    %147 = vector.broadcast %cst_52 : f32 to vector<2x32xf32>
    %148 = arith.addf %147, %146 : vector<2x32xf32>
    %149 = arith.divf %147, %148 : vector<2x32xf32>
    %150 = vector.extract_strided_slice %131 {offsets = [0, 64], sizes = [2, 32], strides = [1, 1]} : vector<2x96xf32> to vector<2x32xf32>
    %151 = arith.mulf %149, %130 : vector<2x32xf32>
    %c0_53 = arith.constant 0 : index
    %c0_54 = arith.constant 0 : index
    %152 = vector.load %arg8[%c0_53, %c0_54] : memref<32x32xf32, #tpu.memory_space<vmem>>, vector<32x32xf32>
    %cst_55 = arith.constant dense<0.000000e+00> : vector<2x32xf32>
    %153 = tpu.matmul %151, %152, %cst_55 {dimension_numbers = #tpu.dot_dimension_numbers<[1], [0], [0], [1], [0, 0, 1, 1], [], []>} : vector<2x32xf32>, vector<32x32xf32>, vector<2x32xf32> -> vector<2x32xf32>
    %154 = arith.addf %150, %153 : vector<2x32xf32>
    %155 = math.tanh %154 : vector<2x32xf32>
    %cst_56 = arith.constant 1.000000e+00 : f32
    %156 = vector.broadcast %cst_56 : f32 to vector<2x32xf32>
    %157 = arith.subf %156, %141 : vector<2x32xf32>
    %158 = arith.mulf %157, %130 : vector<2x32xf32>
    %159 = arith.mulf %141, %155 : vector<2x32xf32>
    %160 = arith.addf %158, %159 : vector<2x32xf32>
    %161 = vector.extract_strided_slice %9 {offsets = [10, 0], sizes = [2, 96], strides = [1, 1]} : vector<16x96xf32> to vector<2x96xf32>
    %c0_57 = arith.constant 0 : index
    %c0_58 = arith.constant 0 : index
    %162 = vector.load %arg7[%c0_57, %c0_58] : memref<32x64xf32, #tpu.memory_space<vmem>>, vector<32x64xf32>
    %cst_59 = arith.constant dense<0.000000e+00> : vector<2x64xf32>
    %163 = tpu.matmul %160, %162, %cst_59 {dimension_numbers = #tpu.dot_dimension_numbers<[1], [0], [0], [1], [0, 0, 1, 1], [], []>} : vector<2x32xf32>, vector<32x64xf32>, vector<2x64xf32> -> vector<2x64xf32>
    %164 = vector.extract_strided_slice %161 {offsets = [0, 0], sizes = [2, 32], strides = [1, 1]} : vector<2x96xf32> to vector<2x32xf32>
    %165 = vector.extract_strided_slice %163 {offsets = [0, 0], sizes = [2, 32], strides = [1, 1]} : vector<2x64xf32> to vector<2x32xf32>
    %166 = arith.addf %164, %165 : vector<2x32xf32>
    %167 = arith.negf %166 : vector<2x32xf32>
    %168 = math.exp %167 : vector<2x32xf32>
    %cst_60 = arith.constant 1.000000e+00 : f32
    %169 = vector.broadcast %cst_60 : f32 to vector<2x32xf32>
    %170 = arith.addf %169, %168 : vector<2x32xf32>
    %171 = arith.divf %169, %170 : vector<2x32xf32>
    %172 = vector.extract_strided_slice %161 {offsets = [0, 32], sizes = [2, 32], strides = [1, 1]} : vector<2x96xf32> to vector<2x32xf32>
    %173 = vector.extract_strided_slice %163 {offsets = [0, 32], sizes = [2, 32], strides = [1, 1]} : vector<2x64xf32> to vector<2x32xf32>
    %174 = arith.addf %172, %173 : vector<2x32xf32>
    %175 = arith.negf %174 : vector<2x32xf32>
    %176 = math.exp %175 : vector<2x32xf32>
    %cst_61 = arith.constant 1.000000e+00 : f32
    %177 = vector.broadcast %cst_61 : f32 to vector<2x32xf32>
    %178 = arith.addf %177, %176 : vector<2x32xf32>
    %179 = arith.divf %177, %178 : vector<2x32xf32>
    %180 = vector.extract_strided_slice %161 {offsets = [0, 64], sizes = [2, 32], strides = [1, 1]} : vector<2x96xf32> to vector<2x32xf32>
    %181 = arith.mulf %179, %160 : vector<2x32xf32>
    %c0_62 = arith.constant 0 : index
    %c0_63 = arith.constant 0 : index
    %182 = vector.load %arg8[%c0_62, %c0_63] : memref<32x32xf32, #tpu.memory_space<vmem>>, vector<32x32xf32>
    %cst_64 = arith.constant dense<0.000000e+00> : vector<2x32xf32>
    %183 = tpu.matmul %181, %182, %cst_64 {dimension_numbers = #tpu.dot_dimension_numbers<[1], [0], [0], [1], [0, 0, 1, 1], [], []>} : vector<2x32xf32>, vector<32x32xf32>, vector<2x32xf32> -> vector<2x32xf32>
    %184 = arith.addf %180, %183 : vector<2x32xf32>
    %185 = math.tanh %184 : vector<2x32xf32>
    %cst_65 = arith.constant 1.000000e+00 : f32
    %186 = vector.broadcast %cst_65 : f32 to vector<2x32xf32>
    %187 = arith.subf %186, %171 : vector<2x32xf32>
    %188 = arith.mulf %187, %160 : vector<2x32xf32>
    %189 = arith.mulf %171, %185 : vector<2x32xf32>
    %190 = arith.addf %188, %189 : vector<2x32xf32>
    %191 = vector.extract_strided_slice %9 {offsets = [12, 0], sizes = [2, 96], strides = [1, 1]} : vector<16x96xf32> to vector<2x96xf32>
    %c0_66 = arith.constant 0 : index
    %c0_67 = arith.constant 0 : index
    %192 = vector.load %arg7[%c0_66, %c0_67] : memref<32x64xf32, #tpu.memory_space<vmem>>, vector<32x64xf32>
    %cst_68 = arith.constant dense<0.000000e+00> : vector<2x64xf32>
    %193 = tpu.matmul %190, %192, %cst_68 {dimension_numbers = #tpu.dot_dimension_numbers<[1], [0], [0], [1], [0, 0, 1, 1], [], []>} : vector<2x32xf32>, vector<32x64xf32>, vector<2x64xf32> -> vector<2x64xf32>
    %194 = vector.extract_strided_slice %191 {offsets = [0, 0], sizes = [2, 32], strides = [1, 1]} : vector<2x96xf32> to vector<2x32xf32>
    %195 = vector.extract_strided_slice %193 {offsets = [0, 0], sizes = [2, 32], strides = [1, 1]} : vector<2x64xf32> to vector<2x32xf32>
    %196 = arith.addf %194, %195 : vector<2x32xf32>
    %197 = arith.negf %196 : vector<2x32xf32>
    %198 = math.exp %197 : vector<2x32xf32>
    %cst_69 = arith.constant 1.000000e+00 : f32
    %199 = vector.broadcast %cst_69 : f32 to vector<2x32xf32>
    %200 = arith.addf %199, %198 : vector<2x32xf32>
    %201 = arith.divf %199, %200 : vector<2x32xf32>
    %202 = vector.extract_strided_slice %191 {offsets = [0, 32], sizes = [2, 32], strides = [1, 1]} : vector<2x96xf32> to vector<2x32xf32>
    %203 = vector.extract_strided_slice %193 {offsets = [0, 32], sizes = [2, 32], strides = [1, 1]} : vector<2x64xf32> to vector<2x32xf32>
    %204 = arith.addf %202, %203 : vector<2x32xf32>
    %205 = arith.negf %204 : vector<2x32xf32>
    %206 = math.exp %205 : vector<2x32xf32>
    %cst_70 = arith.constant 1.000000e+00 : f32
    %207 = vector.broadcast %cst_70 : f32 to vector<2x32xf32>
    %208 = arith.addf %207, %206 : vector<2x32xf32>
    %209 = arith.divf %207, %208 : vector<2x32xf32>
    %210 = vector.extract_strided_slice %191 {offsets = [0, 64], sizes = [2, 32], strides = [1, 1]} : vector<2x96xf32> to vector<2x32xf32>
    %211 = arith.mulf %209, %190 : vector<2x32xf32>
    %c0_71 = arith.constant 0 : index
    %c0_72 = arith.constant 0 : index
    %212 = vector.load %arg8[%c0_71, %c0_72] : memref<32x32xf32, #tpu.memory_space<vmem>>, vector<32x32xf32>
    %cst_73 = arith.constant dense<0.000000e+00> : vector<2x32xf32>
    %213 = tpu.matmul %211, %212, %cst_73 {dimension_numbers = #tpu.dot_dimension_numbers<[1], [0], [0], [1], [0, 0, 1, 1], [], []>} : vector<2x32xf32>, vector<32x32xf32>, vector<2x32xf32> -> vector<2x32xf32>
    %214 = arith.addf %210, %213 : vector<2x32xf32>
    %215 = math.tanh %214 : vector<2x32xf32>
    %cst_74 = arith.constant 1.000000e+00 : f32
    %216 = vector.broadcast %cst_74 : f32 to vector<2x32xf32>
    %217 = arith.subf %216, %201 : vector<2x32xf32>
    %218 = arith.mulf %217, %190 : vector<2x32xf32>
    %219 = arith.mulf %201, %215 : vector<2x32xf32>
    %220 = arith.addf %218, %219 : vector<2x32xf32>
    %221 = vector.extract_strided_slice %9 {offsets = [14, 0], sizes = [2, 96], strides = [1, 1]} : vector<16x96xf32> to vector<2x96xf32>
    %c0_75 = arith.constant 0 : index
    %c0_76 = arith.constant 0 : index
    %222 = vector.load %arg7[%c0_75, %c0_76] : memref<32x64xf32, #tpu.memory_space<vmem>>, vector<32x64xf32>
    %cst_77 = arith.constant dense<0.000000e+00> : vector<2x64xf32>
    %223 = tpu.matmul %220, %222, %cst_77 {dimension_numbers = #tpu.dot_dimension_numbers<[1], [0], [0], [1], [0, 0, 1, 1], [], []>} : vector<2x32xf32>, vector<32x64xf32>, vector<2x64xf32> -> vector<2x64xf32>
    %224 = vector.extract_strided_slice %221 {offsets = [0, 0], sizes = [2, 32], strides = [1, 1]} : vector<2x96xf32> to vector<2x32xf32>
    %225 = vector.extract_strided_slice %223 {offsets = [0, 0], sizes = [2, 32], strides = [1, 1]} : vector<2x64xf32> to vector<2x32xf32>
    %226 = arith.addf %224, %225 : vector<2x32xf32>
    %227 = arith.negf %226 : vector<2x32xf32>
    %228 = math.exp %227 : vector<2x32xf32>
    %cst_78 = arith.constant 1.000000e+00 : f32
    %229 = vector.broadcast %cst_78 : f32 to vector<2x32xf32>
    %230 = arith.addf %229, %228 : vector<2x32xf32>
    %231 = arith.divf %229, %230 : vector<2x32xf32>
    %232 = vector.extract_strided_slice %221 {offsets = [0, 32], sizes = [2, 32], strides = [1, 1]} : vector<2x96xf32> to vector<2x32xf32>
    %233 = vector.extract_strided_slice %223 {offsets = [0, 32], sizes = [2, 32], strides = [1, 1]} : vector<2x64xf32> to vector<2x32xf32>
    %234 = arith.addf %232, %233 : vector<2x32xf32>
    %235 = arith.negf %234 : vector<2x32xf32>
    %236 = math.exp %235 : vector<2x32xf32>
    %cst_79 = arith.constant 1.000000e+00 : f32
    %237 = vector.broadcast %cst_79 : f32 to vector<2x32xf32>
    %238 = arith.addf %237, %236 : vector<2x32xf32>
    %239 = arith.divf %237, %238 : vector<2x32xf32>
    %240 = vector.extract_strided_slice %221 {offsets = [0, 64], sizes = [2, 32], strides = [1, 1]} : vector<2x96xf32> to vector<2x32xf32>
    %241 = arith.mulf %239, %220 : vector<2x32xf32>
    %c0_80 = arith.constant 0 : index
    %c0_81 = arith.constant 0 : index
    %242 = vector.load %arg8[%c0_80, %c0_81] : memref<32x32xf32, #tpu.memory_space<vmem>>, vector<32x32xf32>
    %cst_82 = arith.constant dense<0.000000e+00> : vector<2x32xf32>
    %243 = tpu.matmul %241, %242, %cst_82 {dimension_numbers = #tpu.dot_dimension_numbers<[1], [0], [0], [1], [0, 0, 1, 1], [], []>} : vector<2x32xf32>, vector<32x32xf32>, vector<2x32xf32> -> vector<2x32xf32>
    %244 = arith.addf %240, %243 : vector<2x32xf32>
    %245 = math.tanh %244 : vector<2x32xf32>
    %cst_83 = arith.constant 1.000000e+00 : f32
    %246 = vector.broadcast %cst_83 : f32 to vector<2x32xf32>
    %247 = arith.subf %246, %231 : vector<2x32xf32>
    %248 = arith.mulf %247, %220 : vector<2x32xf32>
    %249 = arith.mulf %231, %245 : vector<2x32xf32>
    %250 = arith.addf %248, %249 : vector<2x32xf32>
    %251 = tpu.concatenate %40, %70, %100, %130, %160, %190, %220, %250 in 0 : vector<2x32xf32>, vector<2x32xf32>, vector<2x32xf32>, vector<2x32xf32>, vector<2x32xf32>, vector<2x32xf32>, vector<2x32xf32>, vector<2x32xf32> -> vector<16x32xf32>
    %c0_84 = arith.constant 0 : index
    %c0_85 = arith.constant 0 : index
    %252 = vector.load %arg12[%c0_84, %c0_85] : memref<16x32xf32, #tpu.memory_space<vmem>>, vector<16x32xf32>
    tpu.vector_store %arg12[%c0_84, %c0_85], %251 {strides = array<i32>} : memref<16x32xf32, #tpu.memory_space<vmem>>, vector<16x32xf32>,
    %c0_86 = arith.constant 0 : index
    %c0_87 = arith.constant 0 : index
    %253 = vector.load %arg9[%c0_86, %c0_87] : memref<32x16xf32, #tpu.memory_space<vmem>>, vector<32x16xf32>
    %cst_88 = arith.constant dense<0.000000e+00> : vector<2x16xf32>
    %254 = tpu.matmul %250, %253, %cst_88 {dimension_numbers = #tpu.dot_dimension_numbers<[1], [0], [0], [1], [0, 0, 1, 1], [], []>} : vector<2x32xf32>, vector<32x16xf32>, vector<2x16xf32> -> vector<2x16xf32>
    %c0_89 = arith.constant 0 : index
    %c0_90 = arith.constant 0 : index
    %255 = vector.load %arg10[%c0_89, %c0_90] : memref<1x16xf32, #tpu.memory_space<vmem>>, vector<1x16xf32>
    %256 = vector.broadcast %255 : vector<1x16xf32> to vector<2x16xf32>
    %257 = arith.addf %254, %256 : vector<2x16xf32>
    %cst_91 = arith.constant 0.000000e+00 : f32
    %258 = vector.broadcast %cst_91 : f32 to vector<2x16xf32>
    %259 = arith.maximumf %257, %258 : vector<2x16xf32>
    %c0_92 = arith.constant 0 : index
    %c0_93 = arith.constant 0 : index
    %260 = vector.load %arg11[%c0_92, %c0_93] : memref<2x16xf32, #tpu.memory_space<vmem>>, vector<2x16xf32>
    tpu.vector_store %arg11[%c0_92, %c0_93], %259 {strides = array<i32>} : memref<2x16xf32, #tpu.memory_space<vmem>>, vector<2x16xf32>,
    return
  }
  func.func @transform_0(%arg0: i32) -> (i32, i32) {
    %c0_i32 = arith.constant 0 : i32
    %c0_i32_0 = arith.constant 0 : i32
    %c0_i32_1 = arith.constant 0 : i32
    return %c0_i32, %c0_i32_0 : i32, i32
  }
  func.func @transform_1(%arg0: i32) -> (i32, i32) {
    %c0_i32 = arith.constant 0 : i32
    %c0_i32_0 = arith.constant 0 : i32
    %c0_i32_1 = arith.constant 0 : i32
    return %c0_i32, %c0_i32_0 : i32, i32
  }
  func.func @transform_2(%arg0: i32) -> (i32, i32) {
    %c0_i32 = arith.constant 0 : i32
    %c0_i32_0 = arith.constant 0 : i32
    %c0_i32_1 = arith.constant 0 : i32
    return %c0_i32, %c0_i32_0 : i32, i32
  }
  func.func @transform_3(%arg0: i32) -> (i32, i32) {
    %c0_i32 = arith.constant 0 : i32
    %c0_i32_0 = arith.constant 0 : i32
    %c0_i32_1 = arith.constant 0 : i32
    return %c0_i32, %c0_i32_0 : i32, i32
  }
  func.func @transform_4(%arg0: i32) -> (i32, i32) {
    %c0_i32 = arith.constant 0 : i32
    %c0_i32_0 = arith.constant 0 : i32
    %c0_i32_1 = arith.constant 0 : i32
    return %c0_i32, %c0_i32_0 : i32, i32
  }
  func.func @transform_5(%arg0: i32) -> (i32, i32) {
    %c0_i32 = arith.constant 0 : i32
    %c0_i32_0 = arith.constant 0 : i32
    %c0_i32_1 = arith.constant 0 : i32
    return %c0_i32, %c0_i32_0 : i32, i32
  }
  func.func @transform_6(%arg0: i32) -> (i32, i32) {
    %c0_i32 = arith.constant 0 : i32
    %c0_i32_0 = arith.constant 0 : i32
    %c0_i32_1 = arith.constant 0 : i32
    return %c0_i32, %c0_i32_0 : i32, i32
  }
  func.func @transform_7(%arg0: i32) -> (i32, i32) {
    %c0_i32 = arith.constant 0 : i32
    %c0_i32_0 = arith.constant 0 : i32
    %c0_i32_1 = arith.constant 0 : i32
    return %c0_i32, %c0_i32_0 : i32, i32
  }
  func.func @transform_8(%arg0: i32) -> (i32, i32) {
    %c0_i32 = arith.constant 0 : i32
    %c0_i32_0 = arith.constant 0 : i32
    %c0_i32_1 = arith.constant 0 : i32
    return %c0_i32, %c0_i32_0 : i32, i32
  }
  func.func @transform_9(%arg0: i32) -> (i32, i32) {
    %c0_i32 = arith.constant 0 : i32
    %c0_i32_0 = arith.constant 0 : i32
    %c0_i32_1 = arith.constant 0 : i32
    return %c0_i32, %c0_i32_0 : i32, i32
  }
  func.func @transform_10(%arg0: i32) -> (i32, i32) {
    %c0_i32 = arith.constant 0 : i32
    %c0_i32_0 = arith.constant 0 : i32
    %c0_i32_1 = arith.constant 0 : i32
    return %c0_i32, %c0_i32_0 : i32, i32
  }
  func.func @transform_11(%arg0: i32) -> (i32, i32) {
    %c0_i32 = arith.constant 0 : i32
    %c0_i32_0 = arith.constant 0 : i32
    %c0_i32_1 = arith.constant 0 : i32
    return %c0_i32, %c0_i32_0 : i32, i32
  }
}

</mosaic_0001>

<llo_original>
// kernel: tpu_custom_call.1
$region0: #{tpu_custom_call.1}
  #allocation0 [shape = 'u32[]', space=smem, size = 0x4, offset = 0x4, fixed_abs, tag = 'smem constant byte address 0x4 - core index']
  #allocation1 [shape = 'u32[144,128]{1,0:T(1,128)}', space=vmem, size = 0x12000, scoped, tag = 'internal scratch']
  %s0 = inlined_call_operand.hbm [shape: f32[16,32], index: 0, kind: input, shape index: {}]
  %s1 = inlined_call_operand.hbm [shape: f32[16,32], index: 1, kind: input, shape index: {}]
  %s2 = inlined_call_operand.vmem [shape: f32[2,32], index: 2, kind: input, shape index: {}]
  %s3 = inlined_call_operand.vmem [shape: f32[32,96], index: 3, kind: input, shape index: {}]
  %s4 = inlined_call_operand.hbm [shape: f32[32,96], index: 4, kind: input, shape index: {}]
  %s5 = inlined_call_operand.hbm [shape: f32[1,96], index: 5, kind: input, shape index: {}]
  %s6 = inlined_call_operand.vmem [shape: f32[32,64], index: 6, kind: input, shape index: {}]
  %s7 = inlined_call_operand.hbm [shape: f32[32,32], index: 7, kind: input, shape index: {}]
  %s8 = inlined_call_operand.vmem [shape: f32[32,16], index: 8, kind: input, shape index: {}]
  %s9 = inlined_call_operand.vmem [shape: f32[1,16], index: 9, kind: input, shape index: {}]
  %s10 = inlined_call_operand.hbm [shape: f32[2,16], index: 10, kind: output, shape index: {0}]
  %s11 = inlined_call_operand.hbm [shape: f32[16,32], index: 11, kind: output, shape index: {1}]
  %12 = xla_tuple %s10, %s11
  %s13 = sld [smem:[#allocation0]]
  $region78: #{tpu_custom_call.1} parent=0
    _
  %s15 = ssub.s32 1, %s13
  %s16 = scalar_select 0, %s15, %s13
  $region1: #{tpu_custom_call.1} parent=0
    #allocation2 [shape = 'u8[8192]{0}', space=vmem, size = 0x2000, scoped, tag = 'input window, operand 0, single buffered']
    #allocation3 [shape = 's32[1]{0}', space=sflag, size = 0x4, scoped, tag = 'scoped memory for tpu_custom_call.1']
    #allocation4 [shape = 's32[1]{0}', space=sflag, size = 0x4, scoped, tag = 'scoped memory for tpu_custom_call.1']
    #allocation5 [shape = 'u8[8192]{0}', space=vmem, size = 0x2000, scoped, tag = 'input window, operand 1, single buffered']
    #allocation6 [shape = 's32[1]{0}', space=sflag, size = 0x4, scoped, tag = 'scoped memory for tpu_custom_call.1']
    #allocation7 [shape = 'u8[16384]{0}', space=vmem, size = 0x4000, scoped, tag = 'input window, operand 4, single buffered']
    #allocation8 [shape = 'u8[512]{0}', space=vmem, size = 0x400, scoped, tag = 'input window, operand 5, single buffered']
    #allocation9 [shape = 's32[1]{0}', space=sflag, size = 0x4, scoped, tag = 'scoped memory for tpu_custom_call.1']
    #allocation10 [shape = 'u8[16384]{0}', space=vmem, size = 0x4000, scoped, tag = 'input window, operand 7, single buffered']
    #allocation11 [shape = 'u8[1024]{0}', space=vmem, size = 0x400, scoped, tag = 'output window, operand 0, single buffered']
    #allocation12 [shape = 'u8[8192]{0}', space=vmem, size = 0x2000, scoped, tag = 'output window, operand 1, single buffered']
    #allocation13 [shape = 's32[1]{0}', space=sflag, size = 0x4, scoped, tag = 'scoped memory for tpu_custom_call.1']
    %17 = vsyncpa [#allocation3], 0
    %18 = vsyncpa [#allocation6], 0
    %19 = vsyncpa [#allocation9], 0
    %20 = vsyncpa [#allocation4], 0
    %21 = vsyncpa [#allocation13], 0
    // Predicated region
    $region2: #{tpu_custom_call.1} parent=1 // pred_check
      _
    $region3: #{tpu_custom_call.1} parent=1 // pred_check_branch
      %23 = sbr.rel (0) target = $region5
    $region4: #{tpu_custom_call.1} parent=1 // pred_region
      %s25 = ssub.s32 256, 256
      %26 = vsyncadd [#allocation3], %s25
      %s27 = sshll.u32 [#allocation2], 4
      %s28 = int_to_ptr.vmem [resolvable:$true] %s27
      %33 = dma.hbm_to_vmem [thread:$0]  %s0, 256, %s28, [#allocation3], 128, 128, 8
    $region5: #{tpu_custom_call.1} parent=1 // pred_fallthru
      _
    // Predicated region
    $region6: #{tpu_custom_call.1} parent=1 // pred_check
      _
    $region7: #{tpu_custom_call.1} parent=1 // pred_check_branch
      %35 = sbr.rel (0) target = $region9
    $region8: #{tpu_custom_call.1} parent=1 // pred_region
      %s37 = ssub.s32 256, 256
      %38 = vsyncadd [#allocation6], %s37
      %s39 = sshll.u32 [#allocation5], 4
      %s40 = int_to_ptr.vmem [resolvable:$true] %s39
      %45 = dma.hbm_to_vmem [thread:$0]  %s1, 256, %s40, [#allocation6], 128, 128, 8
    $region9: #{tpu_custom_call.1} parent=1 // pred_fallthru
      _
    // Predicated region
    $region10: #{tpu_custom_call.1} parent=1 // pred_check
      _
    $region11: #{tpu_custom_call.1} parent=1 // pred_check_branch
      %47 = sbr.rel (0) target = $region13
    $region12: #{tpu_custom_call.1} parent=1 // pred_region
      _
    $region13: #{tpu_custom_call.1} parent=1 // pred_fallthru
      _
    // Predicated region
    $region14: #{tpu_custom_call.1} parent=1 // pred_check
      _
    $region15: #{tpu_custom_call.1} parent=1 // pred_check_branch
      %49 = sbr.rel (0) target = $region17
    $region16: #{tpu_custom_call.1} parent=1 // pred_region
      _
    $region17: #{tpu_custom_call.1} parent=1 // pred_fallthru
      _
    // Predicated region
    $region18: #{tpu_custom_call.1} parent=1 // pred_check
      _
    $region19: #{tpu_custom_call.1} parent=1 // pred_check_branch
      %51 = sbr.rel (0) target = $region21
    $region20: #{tpu_custom_call.1} parent=1 // pred_region
      %s53 = ssub.s32 512, 512
      %54 = vsyncadd [#allocation6], %s53
      %s55 = sshll.u32 [#allocation7], 4
      %s56 = int_to_ptr.vmem [resolvable:$true] %s55
      %61 = dma.hbm_to_vmem [thread:$0]  %s4, 512, %s56, [#allocation6], 128, 128, 8
    $region21: #{tpu_custom_call.1} parent=1 // pred_fallthru
      _
    // Predicated region
    $region22: #{tpu_custom_call.1} parent=1 // pred_check
      _
    $region23: #{tpu_custom_call.1} parent=1 // pred_check_branch
      %63 = sbr.rel (0) target = $region25
    $region24: #{tpu_custom_call.1} parent=1 // pred_region
      %s65 = ssub.s32 16, 16
      %66 = vsyncadd [#allocation9], %s65
      %s68 = sshll.u32 [#allocation8], 4
      %s69 = int_to_ptr.vmem [resolvable:$true] %s68
      %71 = dma.hbm_to_vmem [thread:$0]  %s5, 16, %s69, [#allocation9]
    $region25: #{tpu_custom_call.1} parent=1 // pred_fallthru
      _
    // Predicated region
    $region26: #{tpu_custom_call.1} parent=1 // pred_check
      _
    $region27: #{tpu_custom_call.1} parent=1 // pred_check_branch
      %73 = sbr.rel (0) target = $region29
    $region28: #{tpu_custom_call.1} parent=1 // pred_region
      _
    $region29: #{tpu_custom_call.1} parent=1 // pred_fallthru
      _
    // Predicated region
    $region30: #{tpu_custom_call.1} parent=1 // pred_check
      _
    $region31: #{tpu_custom_call.1} parent=1 // pred_check_branch
      %75 = sbr.rel (0) target = $region33
    $region32: #{tpu_custom_call.1} parent=1 // pred_region
      %s77 = ssub.s32 512, 512
      %78 = vsyncadd [#allocation9], %s77
      %s79 = sshll.u32 [#allocation10], 4
      %s80 = int_to_ptr.vmem [resolvable:$true] %s79
      %85 = dma.hbm_to_vmem [thread:$0]  %s7, 512, %s80, [#allocation9], 128, 128, 8
    $region33: #{tpu_custom_call.1} parent=1 // pred_fallthru
      _
    // Predicated region
    $region34: #{tpu_custom_call.1} parent=1 // pred_check
      _
    $region35: #{tpu_custom_call.1} parent=1 // pred_check_branch
      %87 = sbr.rel (0) target = $region37
    $region36: #{tpu_custom_call.1} parent=1 // pred_region
      _
    $region37: #{tpu_custom_call.1} parent=1 // pred_fallthru
      _
    // Predicated region
    $region38: #{tpu_custom_call.1} parent=1 // pred_check
      _
    $region39: #{tpu_custom_call.1} parent=1 // pred_check_branch
      %89 = sbr.rel (0) target = $region41
    $region40: #{tpu_custom_call.1} parent=1 // pred_region
      _
    $region41: #{tpu_custom_call.1} parent=1 // pred_fallthru
      _
    // Predicated region
    $region42: #{tpu_custom_call.1} parent=1 // pred_check
      _
    $region43: #{tpu_custom_call.1} parent=1 // pred_check_branch
      %91 = sbr.rel (0) target = $region45
    $region44: #{tpu_custom_call.1} parent=1 // pred_region
      %92 = dma.done [#allocation3], 256
    $region45: #{tpu_custom_call.1} parent=1 // pred_fallthru
      _
    // Predicated region
    $region46: #{tpu_custom_call.1} parent=1 // pred_check
      _
    $region47: #{tpu_custom_call.1} parent=1 // pred_check_branch
      %94 = sbr.rel (0) target = $region49
    $region48: #{tpu_custom_call.1} parent=1 // pred_region
      %95 = dma.done [#allocation6], 256
    $region49: #{tpu_custom_call.1} parent=1 // pred_fallthru
      _
    // Predicated region
    $region50: #{tpu_custom_call.1} parent=1 // pred_check
      _
    $region51: #{tpu_custom_call.1} parent=1 // pred_check_branch
      %97 = sbr.rel (0) target = $region53
    $region52: #{tpu_custom_call.1} parent=1 // pred_region
      %98 = dma.done [#allocation6], 512
    $region53: #{tpu_custom_call.1} parent=1 // pred_fallthru
      _
    // Predicated region
    $region54: #{tpu_custom_call.1} parent=1 // pred_check
      _
    $region55: #{tpu_custom_call.1} parent=1 // pred_check_branch
      %100 = sbr.rel (0) target = $region57
    $region56: #{tpu_custom_call.1} parent=1 // pred_region
      %101 = dma.done [#allocation9], 16
    $region57: #{tpu_custom_call.1} parent=1 // pred_fallthru
      _
    // Predicated region
    $region58: #{tpu_custom_call.1} parent=1 // pred_check
      _
    $region59: #{tpu_custom_call.1} parent=1 // pred_check_branch
      %103 = sbr.rel (0) target = $region61
    $region60: #{tpu_custom_call.1} parent=1 // pred_region
      %104 = dma.done [#allocation9], 512
    $region61: #{tpu_custom_call.1} parent=1 // pred_fallthru
      _
    %v105 = vld [vmem:[#allocation2] sm:$0xff]
    %v106 = vld [vmem:[#allocation2 + $0x8] sm:$0xff]
    %v107 = vld [vmem:[%s3] sm:$0xff]
    %v108 = vld [vmem:[%s3 + $0x8] sm:$0xff]
    %v109 = vld [vmem:[%s3 + $0x10] sm:$0xff]
    %v110 = vld [vmem:[%s3 + $0x18] sm:$0xff]
    %v111 = vld [vmem:[#allocation5] sm:$0xff]
    %v112 = vld [vmem:[#allocation5 + $0x8] sm:$0xff]
    %v113 = vld [vmem:[#allocation7] sm:$0xff]
    %v114 = vld [vmem:[#allocation7 + $0x8] sm:$0xff]
    %v115 = vld [vmem:[#allocation7 + $0x10] sm:$0xff]
    %v116 = vld [vmem:[#allocation7 + $0x18] sm:$0xff]
    %vm117 = vcmask 261120
    %v119 = vsel %vm117, %v111, 0
    %v122 = vsel %vm117, %v112, 0
    %124 = vmatprep.subr.mxu0 0.0
    %125 = vmatpush1.msra.mxu0 %v113
    %126 = vmatprep.subr.mxu0 0.0
    %127 = vmatpush1.msra.mxu0 %v114
    %128 = vmatprep.subr.mxu0 0.0
    %129 = vmatpush1.msra.mxu0 %v115
    %130 = vmatprep.subr.mxu0 0.0
    %131 = vmatpush1.msra.mxu0 %v116
    %132 = vmatprep.subr.mxu0 0.0
    %133 = vmatpush1.msra.mxu0 0.0
    %134 = vmatprep.subr.mxu0 0.0
    %135 = vmatpush1.msra.mxu0 0.0
    %136 = vmatprep.subr.mxu0 0.0
    %137 = vmatpush1.msra.mxu0 0.0
    %138 = vmatprep.subr.mxu0 0.0
    %139 = vmatpush1.msra.mxu0 0.0
    %140 = vmatprep.subr.mxu0 0.0
    %141 = vmatpush1.msra.mxu0 0.0
    %142 = vmatprep.subr.mxu0 0.0
    %143 = vmatpush1.msra.mxu0 0.0
    %144 = vmatprep.subr.mxu0 0.0
    %145 = vmatpush1.msra.mxu0 0.0
    %146 = vmatprep.subr.mxu0 0.0
    %147 = vmatpush1.msra.mxu0 0.0
    %148 = vmatprep.subr.mxu0 0.0
    %149 = vmatpush1.msra.mxu0 0.0
    %150 = vmatprep.subr.mxu0 0.0
    %151 = vmatpush1.msra.mxu0 0.0
    %152 = vmatprep.subr.mxu0 0.0
    %153 = vmatpush1.msra.mxu0 0.0
    %154 = vmatprep.subr.mxu0 0.0
    %155 = vmatpush1.msra.mxu0 0.0
    %156 = vmatprep.subr.mxu0 0.0
    %157 = vmatpush1.msra.mxu0 0.0
    %158 = vmatprep.subr.mxu0 0.0
    %159 = vmatpush1.msra.mxu0 0.0
    %160 = vmatprep.subr.mxu0 0.0
    %161 = vmatpush1.msra.mxu0 0.0
    %162 = vmatprep.subr.mxu0 0.0
    %163 = vmatpush1.msra.mxu0 0.0
    %164 = vmatprep.subr.mxu0 0.0
    %165 = vmatpush1.msra.mxu0 0.0
    %166 = vmatprep.subr.mxu0 0.0
    %167 = vmatpush1.msra.mxu0 0.0
    %168 = vmatprep.subr.mxu0 0.0
    %169 = vmatpush1.msra.mxu0 0.0
    %170 = vmatprep.subr.mxu0 0.0
    %171 = vmatpush1.msra.mxu0 0.0
    %172 = vmatprep.subr.mxu0 0.0
    %173 = vmatpush1.msra.mxu0 0.0
    %174 = vmatprep.subr.mxu0 0.0
    %175 = vmatpush1.msra.mxu0 0.0
    %176 = vmatprep.subr.mxu0 0.0
    %177 = vmatpush1.msra.mxu0 0.0
    %178 = vmatprep.subr.mxu0 0.0
    %179 = vmatpush1.msra.mxu0 0.0
    %180 = vmatprep.subr.mxu0 0.0
    %181 = vmatpush1.msra.mxu0 0.0
    %182 = vmatprep.subr.mxu0 0.0
    %183 = vmatpush1.msra.mxu0 0.0
    %184 = vmatprep.subr.mxu0 0.0
    %185 = vmatpush1.msra.mxu0 0.0
    %186 = vmatprep.subr.mxu0 0.0
    %187 = vmatpush1.msra.mxu0 0.0
    %188 = vmatprep.mubr.f32.mxu0 0.0
    %189 = vmatmul.mubr.f32.gmra.mrb[0].mxu0 %v119
    %v190 = vpop.f32.mrb[0].mxu0
    %v191 = vadd.f32 0.0, %v190
    %v192 = vpop.f32.mrb[0].mxu0
    %193 = vmatprep.mubr.f32.mxu0 0.0
    %194 = vmatmul.mubr.f32.gmra.mrb[0].mxu0 %v122
    %v195 = vpop.f32.mrb[0].mxu0
    %v196 = vadd.f32 0.0, %v195
    %v197 = vpop.f32.mrb[0].mxu0
    %198 = vdwg.mxu0
    %v200 = vsel %vm117, %v105, 0
    %v203 = vsel %vm117, %v106, 0
    %205 = vmatprep.subr.mxu0 0.0
    %206 = vmatpush1.msra.mxu0 %v107
    %207 = vmatprep.subr.mxu0 0.0
    %208 = vmatpush1.msra.mxu0 %v108
    %209 = vmatprep.subr.mxu0 0.0
    %210 = vmatpush1.msra.mxu0 %v109
    %211 = vmatprep.subr.mxu0 0.0
    %212 = vmatpush1.msra.mxu0 %v110
    %213 = vmatprep.subr.mxu0 0.0
    %214 = vmatpush1.msra.mxu0 0.0
    %215 = vmatprep.subr.mxu0 0.0
    %216 = vmatpush1.msra.mxu0 0.0
    %217 = vmatprep.subr.mxu0 0.0
    %218 = vmatpush1.msra.mxu0 0.0
    %219 = vmatprep.subr.mxu0 0.0
    %220 = vmatpush1.msra.mxu0 0.0
    %221 = vmatprep.subr.mxu0 0.0
    %222 = vmatpush1.msra.mxu0 0.0
    %223 = vmatprep.subr.mxu0 0.0
    %224 = vmatpush1.msra.mxu0 0.0
    %225 = vmatprep.subr.mxu0 0.0
    %226 = vmatpush1.msra.mxu0 0.0
    %227 = vmatprep.subr.mxu0 0.0
    %228 = vmatpush1.msra.mxu0 0.0
    %229 = vmatprep.subr.mxu0 0.0
    %230 = vmatpush1.msra.mxu0 0.0
    %231 = vmatprep.subr.mxu0 0.0
    %232 = vmatpush1.msra.mxu0 0.0
    %233 = vmatprep.subr.mxu0 0.0
    %234 = vmatpush1.msra.mxu0 0.0
    %235 = vmatprep.subr.mxu0 0.0
    %236 = vmatpush1.msra.mxu0 0.0
    %237 = vmatprep.subr.mxu0 0.0
    %238 = vmatpush1.msra.mxu0 0.0
    %239 = vmatprep.subr.mxu0 0.0
    %240 = vmatpush1.msra.mxu0 0.0
    %241 = vmatprep.subr.mxu0 0.0
    %242 = vmatpush1.msra.mxu0 0.0
    %243 = vmatprep.subr.mxu0 0.0
    %244 = vmatpush1.msra.mxu0 0.0
    %245 = vmatprep.subr.mxu0 0.0
    %246 = vmatpush1.msra.mxu0 0.0
    %247 = vmatprep.subr.mxu0 0.0
    %248 = vmatpush1.msra.mxu0 0.0
    %249 = vmatprep.subr.mxu0 0.0
    %250 = vmatpush1.msra.mxu0 0.0
    %251 = vmatprep.subr.mxu0 0.0
    %252 = vmatpush1.msra.mxu0 0.0
    %253 = vmatprep.subr.mxu0 0.0
    %254 = vmatpush1.msra.mxu0 0.0
    %255 = vmatprep.subr.mxu0 0.0
    %256 = vmatpush1.msra.mxu0 0.0
    %257 = vmatprep.subr.mxu0 0.0
    %258 = vmatpush1.msra.mxu0 0.0
    %259 = vmatprep.subr.mxu0 0.0
    %260 = vmatpush1.msra.mxu0 0.0
    %261 = vmatprep.subr.mxu0 0.0
    %262 = vmatpush1.msra.mxu0 0.0
    %263 = vmatprep.subr.mxu0 0.0
    %264 = vmatpush1.msra.mxu0 0.0
    %265 = vmatprep.subr.mxu0 0.0
    %266 = vmatpush1.msra.mxu0 0.0
    %267 = vmatprep.subr.mxu0 0.0
    %268 = vmatpush1.msra.mxu0 0.0
    %269 = vmatprep.mubr.f32.mxu0 0.0
    %270 = vmatmul.mubr.f32.gmra.mrb[0].mxu0 %v200
    %v271 = vpop.f32.mrb[0].mxu0
    %v272 = vadd.f32 %v191, %v271
    %v273 = vpop.f32.mrb[0].mxu0
    %274 = vmatprep.mubr.f32.mxu0 0.0
    %275 = vmatmul.mubr.f32.gmra.mrb[0].mxu0 %v203
    %v276 = vpop.f32.mrb[0].mxu0
    %v277 = vadd.f32 %v196, %v276
    %v278 = vpop.f32.mrb[0].mxu0
    %279 = vdwg.mxu0
    %v280 = vld [vmem:[#allocation8] sm:$0x1]
    %v282 = vlaneseq
    %v283 = vshrl.u32 %v282, 7
    %v284 = vsub.s32 0, %v283
    %v285 = vrot.slane %v280, %v284
    %v287 = vadd.f32 %v272, %v285
    %v288 = vadd.f32 %v277, %v285
    %v289 = vld [vmem:[%s2] sm:$0x3]
    %v290 = vld [vmem:[%s6] sm:$0xff]
    %v291 = vld [vmem:[%s6 + $0x8] sm:$0xff]
    %v292 = vld [vmem:[%s6 + $0x10] sm:$0xff]
    %v293 = vld [vmem:[%s6 + $0x18] sm:$0xff]
    %v295 = vsel %vm117, %v289, 0
    %297 = vmatprep.subr.mxu0 0.0
    %298 = vmatpush1.msra.mxu0 %v290
    %299 = vmatprep.subr.mxu0 0.0
    %300 = vmatpush1.msra.mxu0 %v291
    %301 = vmatprep.subr.mxu0 0.0
    %302 = vmatpush1.msra.mxu0 %v292
    %303 = vmatprep.subr.mxu0 0.0
    %304 = vmatpush1.msra.mxu0 %v293
    %305 = vmatprep.subr.mxu0 0.0
    %306 = vmatpush1.msra.mxu0 0.0
    %307 = vmatprep.subr.mxu0 0.0
    %308 = vmatpush1.msra.mxu0 0.0
    %309 = vmatprep.subr.mxu0 0.0
    %310 = vmatpush1.msra.mxu0 0.0
    %311 = vmatprep.subr.mxu0 0.0
    %312 = vmatpush1.msra.mxu0 0.0
    %313 = vmatprep.subr.mxu0 0.0
    %314 = vmatpush1.msra.mxu0 0.0
    %315 = vmatprep.subr.mxu0 0.0
    %316 = vmatpush1.msra.mxu0 0.0
    %317 = vmatprep.subr.mxu0 0.0
    %318 = vmatpush1.msra.mxu0 0.0
    %319 = vmatprep.subr.mxu0 0.0
    %320 = vmatpush1.msra.mxu0 0.0
    %321 = vmatprep.subr.mxu0 0.0
    %322 = vmatpush1.msra.mxu0 0.0
    %323 = vmatprep.subr.mxu0 0.0
    %324 = vmatpush1.msra.mxu0 0.0
    %325 = vmatprep.subr.mxu0 0.0
    %326 = vmatpush1.msra.mxu0 0.0
    %327 = vmatprep.subr.mxu0 0.0
    %328 = vmatpush1.msra.mxu0 0.0
    %329 = vmatprep.subr.mxu0 0.0
    %330 = vmatpush1.msra.mxu0 0.0
    %331 = vmatprep.subr.mxu0 0.0
    %332 = vmatpush1.msra.mxu0 0.0
    %333 = vmatprep.subr.mxu0 0.0
    %334 = vmatpush1.msra.mxu0 0.0
    %335 = vmatprep.subr.mxu0 0.0
    %336 = vmatpush1.msra.mxu0 0.0
    %337 = vmatprep.subr.mxu0 0.0
    %338 = vmatpush1.msra.mxu0 0.0
    %339 = vmatprep.subr.mxu0 0.0
    %340 = vmatpush1.msra.mxu0 0.0
    %341 = vmatprep.subr.mxu0 0.0
    %342 = vmatpush1.msra.mxu0 0.0
    %343 = vmatprep.subr.mxu0 0.0
    %344 = vmatpush1.msra.mxu0 0.0
    %345 = vmatprep.subr.mxu0 0.0
    %346 = vmatpush1.msra.mxu0 0.0
    %347 = vmatprep.subr.mxu0 0.0
    %348 = vmatpush1.msra.mxu0 0.0
    %349 = vmatprep.subr.mxu0 0.0
    %350 = vmatpush1.msra.mxu0 0.0
    %351 = vmatprep.subr.mxu0 0.0
    %352 = vmatpush1.msra.mxu0 0.0
    %353 = vmatprep.subr.mxu0 0.0
    %354 = vmatpush1.msra.mxu0 0.0
    %355 = vmatprep.subr.mxu0 0.0
    %356 = vmatpush1.msra.mxu0 0.0
    %357 = vmatprep.subr.mxu0 0.0
    %358 = vmatpush1.msra.mxu0 0.0
    %359 = vmatprep.subr.mxu0 0.0
    %360 = vmatpush1.msra.mxu0 0.0
    %361 = vmatprep.mubr.f32.mxu0 0.0
    %362 = vmatmul.mubr.f32.gmra.mrb[0].mxu0 %v295
    %v363 = vpop.f32.mrb[0].mxu0
    %v364 = vadd.f32 0.0, %v363
    %v365 = vpop.f32.mrb[0].mxu0
    %366 = vdwg.mxu0
    %v367 = vadd.f32 %v287, %v364
    %v368 = vxor.u32 %v367, 2147483648
    %v369 = vmul.f32 %v368, 1.442695
    %v370 = vpow.pop %v369
    %v371 = vadd.f32 %v370, 1.0
    %v372 = vrcp.pop %v371
    %v373 = vmul.f32 1.0, %v372
    %374 = vrot.lane.b32.xlu0 %v289, 32
    %v375 = vpop.permute.xlu0 %374
    %v377 = vmul.f32 %v373, %v375
    %v378 = vld [vmem:[#allocation10] sm:$0xff]
    %v379 = vld [vmem:[#allocation10 + $0x8] sm:$0xff]
    %v380 = vld [vmem:[#allocation10 + $0x10] sm:$0xff]
    %v381 = vld [vmem:[#allocation10 + $0x18] sm:$0xff]
    %383 = vrot.lane.b32.xlu0 %v377, 96
    %v384 = vpop.permute.xlu0 %383
    %v385 = vsel %vm117, %v384, 0
    %387 = vmatprep.subr.mxu0 0.0
    %388 = vmatpush1.msra.mxu0 %v378
    %389 = vmatprep.subr.mxu0 0.0
    %390 = vmatpush1.msra.mxu0 %v379
    %391 = vmatprep.subr.mxu0 0.0
    %392 = vmatpush1.msra.mxu0 %v380
    %393 = vmatprep.subr.mxu0 0.0
    %394 = vmatpush1.msra.mxu0 %v381
    %395 = vmatprep.subr.mxu0 0.0
    %396 = vmatpush1.msra.mxu0 0.0
    %397 = vmatprep.subr.mxu0 0.0
    %398 = vmatpush1.msra.mxu0 0.0
    %399 = vmatprep.subr.mxu0 0.0
    %400 = vmatpush1.msra.mxu0 0.0
    %401 = vmatprep.subr.mxu0 0.0
    %402 = vmatpush1.msra.mxu0 0.0
    %403 = vmatprep.subr.mxu0 0.0
    %404 = vmatpush1.msra.mxu0 0.0
    %405 = vmatprep.subr.mxu0 0.0
    %406 = vmatpush1.msra.mxu0 0.0
    %407 = vmatprep.subr.mxu0 0.0
    %408 = vmatpush1.msra.mxu0 0.0
    %409 = vmatprep.subr.mxu0 0.0
    %410 = vmatpush1.msra.mxu0 0.0
    %411 = vmatprep.subr.mxu0 0.0
    %412 = vmatpush1.msra.mxu0 0.0
    %413 = vmatprep.subr.mxu0 0.0
    %414 = vmatpush1.msra.mxu0 0.0
    %415 = vmatprep.subr.mxu0 0.0
    %416 = vmatpush1.msra.mxu0 0.0
    %417 = vmatprep.subr.mxu0 0.0
    %418 = vmatpush1.msra.mxu0 0.0
    %419 = vmatprep.subr.mxu0 0.0
    %420 = vmatpush1.msra.mxu0 0.0
    %421 = vmatprep.subr.mxu0 0.0
    %422 = vmatpush1.msra.mxu0 0.0
    %423 = vmatprep.subr.mxu0 0.0
    %424 = vmatpush1.msra.mxu0 0.0
    %425 = vmatprep.subr.mxu0 0.0
    %426 = vmatpush1.msra.mxu0 0.0
    %427 = vmatprep.subr.mxu0 0.0
    %428 = vmatpush1.msra.mxu0 0.0
    %429 = vmatprep.subr.mxu0 0.0
    %430 = vmatpush1.msra.mxu0 0.0
    %431 = vmatprep.subr.mxu0 0.0
    %432 = vmatpush1.msra.mxu0 0.0
    %433 = vmatprep.subr.mxu0 0.0
    %434 = vmatpush1.msra.mxu0 0.0
    %435 = vmatprep.subr.mxu0 0.0
    %436 = vmatpush1.msra.mxu0 0.0
    %437 = vmatprep.subr.mxu0 0.0
    %438 = vmatpush1.msra.mxu0 0.0
    %439 = vmatprep.subr.mxu0 0.0
    %440 = vmatpush1.msra.mxu0 0.0
    %441 = vmatprep.subr.mxu0 0.0
    %442 = vmatpush1.msra.mxu0 0.0
    %443 = vmatprep.subr.mxu0 0.0
    %444 = vmatpush1.msra.mxu0 0.0
    %445 = vmatprep.subr.mxu0 0.0
    %446 = vmatpush1.msra.mxu0 0.0
    %447 = vmatprep.subr.mxu0 0.0
    %448 = vmatpush1.msra.mxu0 0.0
    %449 = vmatprep.subr.mxu0 0.0
    %450 = vmatpush1.msra.mxu0 0.0
    %451 = vmatprep.mubr.f32.mxu0 0.0
    %452 = vmatmul.mubr.f32.gmra.mrb[0].mxu0 %v385
    %v453 = vpop.f32.mrb[0].mxu0
    %v454 = vadd.f32 0.0, %v453
    %v455 = vpop.f32.mrb[0].mxu0
    %456 = vdwg.mxu0
    %458 = vrot.lane.b32.xlu0 %v454, 64
    %v459 = vpop.permute.xlu0 %458
    %v461 = vadd.f32 %v287, %v459
    %v462 = vtanh.pop %v461
    %v463 = vsub.f32 1.0, %v373
    %v464 = vmul.f32 %v463, %v289
    %466 = vrot.lane.b32.xlu0 %v462, 64
    %v467 = vpop.permute.xlu0 %466
    %v469 = vmul.f32 %v373, %v467
    %v470 = vadd.f32 %v464, %v469
    %v472 = vsel %vm117, %v470, 0
    %474 = vmatprep.subr.mxu0 0.0
    %475 = vmatpush1.msra.mxu0 %v290
    %476 = vmatprep.subr.mxu0 0.0
    %477 = vmatpush1.msra.mxu0 %v291
    %478 = vmatprep.subr.mxu0 0.0
    %479 = vmatpush1.msra.mxu0 %v292
    %480 = vmatprep.subr.mxu0 0.0
    %481 = vmatpush1.msra.mxu0 %v293
    %482 = vmatprep.subr.mxu0 0.0
    %483 = vmatpush1.msra.mxu0 0.0
    %484 = vmatprep.subr.mxu0 0.0
    %485 = vmatpush1.msra.mxu0 0.0
    %486 = vmatprep.subr.mxu0 0.0
    %487 = vmatpush1.msra.mxu0 0.0
    %488 = vmatprep.subr.mxu0 0.0
    %489 = vmatpush1.msra.mxu0 0.0
    %490 = vmatprep.subr.mxu0 0.0
    %491 = vmatpush1.msra.mxu0 0.0
    %492 = vmatprep.subr.mxu0 0.0
    %493 = vmatpush1.msra.mxu0 0.0
    %494 = vmatprep.subr.mxu0 0.0
    %495 = vmatpush1.msra.mxu0 0.0
    %496 = vmatprep.subr.mxu0 0.0
    %497 = vmatpush1.msra.mxu0 0.0
    %498 = vmatprep.subr.mxu0 0.0
    %499 = vmatpush1.msra.mxu0 0.0
    %500 = vmatprep.subr.mxu0 0.0
    %501 = vmatpush1.msra.mxu0 0.0
    %502 = vmatprep.subr.mxu0 0.0
    %503 = vmatpush1.msra.mxu0 0.0
    %504 = vmatprep.subr.mxu0 0.0
    %505 = vmatpush1.msra.mxu0 0.0
    %506 = vmatprep.subr.mxu0 0.0
    %507 = vmatpush1.msra.mxu0 0.0
    %508 = vmatprep.subr.mxu0 0.0
    %509 = vmatpush1.msra.mxu0 0.0
    %510 = vmatprep.subr.mxu0 0.0
    %511 = vmatpush1.msra.mxu0 0.0
    %512 = vmatprep.subr.mxu0 0.0
    %513 = vmatpush1.msra.mxu0 0.0
    %514 = vmatprep.subr.mxu0 0.0
    %515 = vmatpush1.msra.mxu0 0.0
    %516 = vmatprep.subr.mxu0 0.0
    %517 = vmatpush1.msra.mxu0 0.0
    %518 = vmatprep.subr.mxu0 0.0
    %519 = vmatpush1.msra.mxu0 0.0
    %520 = vmatprep.subr.mxu0 0.0
    %521 = vmatpush1.msra.mxu0 0.0
    %522 = vmatprep.subr.mxu0 0.0
    %523 = vmatpush1.msra.mxu0 0.0
    %524 = vmatprep.subr.mxu0 0.0
    %525 = vmatpush1.msra.mxu0 0.0
    %526 = vmatprep.subr.mxu0 0.0
    %527 = vmatpush1.msra.mxu0 0.0
    %528 = vmatprep.subr.mxu0 0.0
    %529 = vmatpush1.msra.mxu0 0.0
    %530 = vmatprep.subr.mxu0 0.0
    %531 = vmatpush1.msra.mxu0 0.0
    %532 = vmatprep.subr.mxu0 0.0
    %533 = vmatpush1.msra.mxu0 0.0
    %534 = vmatprep.subr.mxu0 0.0
    %535 = vmatpush1.msra.mxu0 0.0
    %536 = vmatprep.subr.mxu0 0.0
    %537 = vmatpush1.msra.mxu0 0.0
    %538 = vmatprep.mubr.f32.mxu0 0.0
    %539 = vmatmul.mubr.f32.gmra.mrb[0].mxu0 %v472
    %v540 = vpop.f32.mrb[0].mxu0
    %v541 = vadd.f32 0.0, %v540
    %v542 = vpop.f32.mrb[0].mxu0
    %543 = vdwg.mxu0
    %v545 = vrot.slane %v541, 6
    %v547 = vadd.f32 %v287, %v545
    %v548 = vxor.u32 %v547, 2147483648
    %v549 = vmul.f32 %v548, 1.442695
    %v550 = vpow.pop %v549
    %v551 = vadd.f32 %v550, 1.0
    %v552 = vrcp.pop %v551
    %v553 = vmul.f32 1.0, %v552
    %v554 = vrot.slane %v470, 6
    %555 = vrot.lane.b32.xlu0 %v554, 32
    %v556 = vpop.permute.xlu0 %555
    %v558 = vmul.f32 %v553, %v556
    %v560 = vrot.slane %v558, 2
    %561 = vrot.lane.b32.xlu0 %v560, 96
    %v562 = vpop.permute.xlu0 %561
    %v563 = vsel %vm117, %v562, 0
    %565 = vmatprep.subr.mxu0 0.0
    %566 = vmatpush1.msra.mxu0 %v378
    %567 = vmatprep.subr.mxu0 0.0
    %568 = vmatpush1.msra.mxu0 %v379
    %569 = vmatprep.subr.mxu0 0.0
    %570 = vmatpush1.msra.mxu0 %v380
    %571 = vmatprep.subr.mxu0 0.0
    %572 = vmatpush1.msra.mxu0 %v381
    %573 = vmatprep.subr.mxu0 0.0
    %574 = vmatpush1.msra.mxu0 0.0
    %575 = vmatprep.subr.mxu0 0.0
    %576 = vmatpush1.msra.mxu0 0.0
    %577 = vmatprep.subr.mxu0 0.0
    %578 = vmatpush1.msra.mxu0 0.0
    %579 = vmatprep.subr.mxu0 0.0
    %580 = vmatpush1.msra.mxu0 0.0
    %581 = vmatprep.subr.mxu0 0.0
    %582 = vmatpush1.msra.mxu0 0.0
    %583 = vmatprep.subr.mxu0 0.0
    %584 = vmatpush1.msra.mxu0 0.0
    %585 = vmatprep.subr.mxu0 0.0
    %586 = vmatpush1.msra.mxu0 0.0
    %587 = vmatprep.subr.mxu0 0.0
    %588 = vmatpush1.msra.mxu0 0.0
    %589 = vmatprep.subr.mxu0 0.0
    %590 = vmatpush1.msra.mxu0 0.0
    %591 = vmatprep.subr.mxu0 0.0
    %592 = vmatpush1.msra.mxu0 0.0
    %593 = vmatprep.subr.mxu0 0.0
    %594 = vmatpush1.msra.mxu0 0.0
    %595 = vmatprep.subr.mxu0 0.0
    %596 = vmatpush1.msra.mxu0 0.0
    %597 = vmatprep.subr.mxu0 0.0
    %598 = vmatpush1.msra.mxu0 0.0
    %599 = vmatprep.subr.mxu0 0.0
    %600 = vmatpush1.msra.mxu0 0.0
    %601 = vmatprep.subr.mxu0 0.0
    %602 = vmatpush1.msra.mxu0 0.0
    %603 = vmatprep.subr.mxu0 0.0
    %604 = vmatpush1.msra.mxu0 0.0
    %605 = vmatprep.subr.mxu0 0.0
    %606 = vmatpush1.msra.mxu0 0.0
    %607 = vmatprep.subr.mxu0 0.0
    %608 = vmatpush1.msra.mxu0 0.0
    %609 = vmatprep.subr.mxu0 0.0
    %610 = vmatpush1.msra.mxu0 0.0
    %611 = vmatprep.subr.mxu0 0.0
    %612 = vmatpush1.msra.mxu0 0.0
    %613 = vmatprep.subr.mxu0 0.0
    %614 = vmatpush1.msra.mxu0 0.0
    %615 = vmatprep.subr.mxu0 0.0
    %616 = vmatpush1.msra.mxu0 0.0
    %617 = vmatprep.subr.mxu0 0.0
    %618 = vmatpush1.msra.mxu0 0.0
    %619 = vmatprep.subr.mxu0 0.0
    %620 = vmatpush1.msra.mxu0 0.0
    %621 = vmatprep.subr.mxu0 0.0
    %622 = vmatpush1.msra.mxu0 0.0
    %623 = vmatprep.subr.mxu0 0.0
    %624 = vmatpush1.msra.mxu0 0.0
    %625 = vmatprep.subr.mxu0 0.0
    %626 = vmatpush1.msra.mxu0 0.0
    %627 = vmatprep.subr.mxu0 0.0
    %628 = vmatpush1.msra.mxu0 0.0
    %629 = vmatprep.mubr.f32.mxu0 0.0
    %630 = vmatmul.mubr.f32.gmra.mrb[0].mxu0 %v563
    %v631 = vpop.f32.mrb[0].mxu0
    %v632 = vadd.f32 0.0, %v631
    %v633 = vpop.f32.mrb[0].mxu0
    %634 = vdwg.mxu0
    %v636 = vrot.slane %v632, 6
    %637 = vrot.lane.b32.xlu0 %v636, 64
    %v638 = vpop.permute.xlu0 %637
    %v640 = vadd.f32 %v287, %v638
    %v641 = vtanh.pop %v640
    %v642 = vsub.f32 1.0, %v553
    %v644 = vmul.f32 %v642, %v554
    %646 = vrot.lane.b32.xlu0 %v641, 64
    %v647 = vpop.permute.xlu0 %646
    %v649 = vmul.f32 %v553, %v647
    %v650 = vadd.f32 %v644, %v649
    %v652 = vrot.slane %v650, 2
    %v653 = vsel %vm117, %v652, 0
    %655 = vmatprep.subr.mxu0 0.0
    %656 = vmatpush1.msra.mxu0 %v290
    %657 = vmatprep.subr.mxu0 0.0
    %658 = vmatpush1.msra.mxu0 %v291
    %659 = vmatprep.subr.mxu0 0.0
    %660 = vmatpush1.msra.mxu0 %v292
    %661 = vmatprep.subr.mxu0 0.0
    %662 = vmatpush1.msra.mxu0 %v293
    %663 = vmatprep.subr.mxu0 0.0
    %664 = vmatpush1.msra.mxu0 0.0
    %665 = vmatprep.subr.mxu0 0.0
    %666 = vmatpush1.msra.mxu0 0.0
    %667 = vmatprep.subr.mxu0 0.0
    %668 = vmatpush1.msra.mxu0 0.0
    %669 = vmatprep.subr.mxu0 0.0
    %670 = vmatpush1.msra.mxu0 0.0
    %671 = vmatprep.subr.mxu0 0.0
    %672 = vmatpush1.msra.mxu0 0.0
    %673 = vmatprep.subr.mxu0 0.0
    %674 = vmatpush1.msra.mxu0 0.0
    %675 = vmatprep.subr.mxu0 0.0
    %676 = vmatpush1.msra.mxu0 0.0
    %677 = vmatprep.subr.mxu0 0.0
    %678 = vmatpush1.msra.mxu0 0.0
    %679 = vmatprep.subr.mxu0 0.0
    %680 = vmatpush1.msra.mxu0 0.0
    %681 = vmatprep.subr.mxu0 0.0
    %682 = vmatpush1.msra.mxu0 0.0
    %683 = vmatprep.subr.mxu0 0.0
    %684 = vmatpush1.msra.mxu0 0.0
    %685 = vmatprep.subr.mxu0 0.0
    %686 = vmatpush1.msra.mxu0 0.0
    %687 = vmatprep.subr.mxu0 0.0
    %688 = vmatpush1.msra.mxu0 0.0
    %689 = vmatprep.subr.mxu0 0.0
    %690 = vmatpush1.msra.mxu0 0.0
    %691 = vmatprep.subr.mxu0 0.0
    %692 = vmatpush1.msra.mxu0 0.0
    %693 = vmatprep.subr.mxu0 0.0
    %694 = vmatpush1.msra.mxu0 0.0
    %695 = vmatprep.subr.mxu0 0.0
    %696 = vmatpush1.msra.mxu0 0.0
    %697 = vmatprep.subr.mxu0 0.0
    %698 = vmatpush1.msra.mxu0 0.0
    %699 = vmatprep.subr.mxu0 0.0
    %700 = vmatpush1.msra.mxu0 0.0
    %701 = vmatprep.subr.mxu0 0.0
    %702 = vmatpush1.msra.mxu0 0.0
    %703 = vmatprep.subr.mxu0 0.0
    %704 = vmatpush1.msra.mxu0 0.0
    %705 = vmatprep.subr.mxu0 0.0
    %706 = vmatpush1.msra.mxu0 0.0
    %707 = vmatprep.subr.mxu0 0.0
    %708 = vmatpush1.msra.mxu0 0.0
    %709 = vmatprep.subr.mxu0 0.0
    %710 = vmatpush1.msra.mxu0 0.0
    %711 = vmatprep.subr.mxu0 0.0
    %712 = vmatpush1.msra.mxu0 0.0
    %713 = vmatprep.subr.mxu0 0.0
    %714 = vmatpush1.msra.mxu0 0.0
    %715 = vmatprep.subr.mxu0 0.0
    %716 = vmatpush1.msra.mxu0 0.0
    %717 = vmatprep.subr.mxu0 0.0
    %718 = vmatpush1.msra.mxu0 0.0
    %719 = vmatprep.mubr.f32.mxu0 0.0
    %720 = vmatmul.mubr.f32.gmra.mrb[0].mxu0 %v653
    %v721 = vpop.f32.mrb[0].mxu0
    %v722 = vadd.f32 0.0, %v721
    %v723 = vpop.f32.mrb[0].mxu0
    %724 = vdwg.mxu0
    %v726 = vrot.slane %v722, 4
    %v728 = vadd.f32 %v287, %v726
    %v729 = vxor.u32 %v728, 2147483648
    %v730 = vmul.f32 %v729, 1.442695
    %v731 = vpow.pop %v730
    %v732 = vadd.f32 %v731, 1.0
    %v733 = vrcp.pop %v732
    %v734 = vmul.f32 1.0, %v733
    %v735 = vrot.slane %v650, 6
    %736 = vrot.lane.b32.xlu0 %v735, 32
    %v737 = vpop.permute.xlu0 %736
    %v739 = vmul.f32 %v734, %v737
    %v741 = vrot.slane %v739, 4
    %742 = vrot.lane.b32.xlu0 %v741, 96
    %v743 = vpop.permute.xlu0 %742
    %v744 = vsel %vm117, %v743, 0
    %746 = vmatprep.subr.mxu0 0.0
    %747 = vmatpush1.msra.mxu0 %v378
    %748 = vmatprep.subr.mxu0 0.0
    %749 = vmatpush1.msra.mxu0 %v379
    %750 = vmatprep.subr.mxu0 0.0
    %751 = vmatpush1.msra.mxu0 %v380
    %752 = vmatprep.subr.mxu0 0.0
    %753 = vmatpush1.msra.mxu0 %v381
    %754 = vmatprep.subr.mxu0 0.0
    %755 = vmatpush1.msra.mxu0 0.0
    %756 = vmatprep.subr.mxu0 0.0
    %757 = vmatpush1.msra.mxu0 0.0
    %758 = vmatprep.subr.mxu0 0.0
    %759 = vmatpush1.msra.mxu0 0.0
    %760 = vmatprep.subr.mxu0 0.0
    %761 = vmatpush1.msra.mxu0 0.0
    %762 = vmatprep.subr.mxu0 0.0
    %763 = vmatpush1.msra.mxu0 0.0
    %764 = vmatprep.subr.mxu0 0.0
    %765 = vmatpush1.msra.mxu0 0.0
    %766 = vmatprep.subr.mxu0 0.0
    %767 = vmatpush1.msra.mxu0 0.0
    %768 = vmatprep.subr.mxu0 0.0
    %769 = vmatpush1.msra.mxu0 0.0
    %770 = vmatprep.subr.mxu0 0.0
    %771 = vmatpush1.msra.mxu0 0.0
    %772 = vmatprep.subr.mxu0 0.0
    %773 = vmatpush1.msra.mxu0 0.0
    %774 = vmatprep.subr.mxu0 0.0
    %775 = vmatpush1.msra.mxu0 0.0
    %776 = vmatprep.subr.mxu0 0.0
    %777 = vmatpush1.msra.mxu0 0.0
    %778 = vmatprep.subr.mxu0 0.0
    %779 = vmatpush1.msra.mxu0 0.0
    %780 = vmatprep.subr.mxu0 0.0
    %781 = vmatpush1.msra.mxu0 0.0
    %782 = vmatprep.subr.mxu0 0.0
    %783 = vmatpush1.msra.mxu0 0.0
    %784 = vmatprep.subr.mxu0 0.0
    %785 = vmatpush1.msra.mxu0 0.0
    %786 = vmatprep.subr.mxu0 0.0
    %787 = vmatpush1.msra.mxu0 0.0
    %788 = vmatprep.subr.mxu0 0.0
    %789 = vmatpush1.msra.mxu0 0.0
    %790 = vmatprep.subr.mxu0 0.0
    %791 = vmatpush1.msra.mxu0 0.0
    %792 = vmatprep.subr.mxu0 0.0
    %793 = vmatpush1.msra.mxu0 0.0
    %794 = vmatprep.subr.mxu0 0.0
    %795 = vmatpush1.msra.mxu0 0.0
    %796 = vmatprep.subr.mxu0 0.0
    %797 = vmatpush1.msra.mxu0 0.0
    %798 = vmatprep.subr.mxu0 0.0
    %799 = vmatpush1.msra.mxu0 0.0
    %800 = vmatprep.subr.mxu0 0.0
    %801 = vmatpush1.msra.mxu0 0.0
    %802 = vmatprep.subr.mxu0 0.0
    %803 = vmatpush1.msra.mxu0 0.0
    %804 = vmatprep.subr.mxu0 0.0
    %805 = vmatpush1.msra.mxu0 0.0
    %806 = vmatprep.subr.mxu0 0.0
    %807 = vmatpush1.msra.mxu0 0.0
    %808 = vmatprep.subr.mxu0 0.0
    %809 = vmatpush1.msra.mxu0 0.0
    %810 = vmatprep.mubr.f32.mxu0 0.0
    %811 = vmatmul.mubr.f32.gmra.mrb[0].mxu0 %v744
    %v812 = vpop.f32.mrb[0].mxu0
    %v813 = vadd.f32 0.0, %v812
    %v814 = vpop.f32.mrb[0].mxu0
    %815 = vdwg.mxu0
    %v817 = vrot.slane %v813, 4
    %818 = vrot.lane.b32.xlu0 %v817, 64
    %v819 = vpop.permute.xlu0 %818
    %v821 = vadd.f32 %v287, %v819
    %v822 = vtanh.pop %v821
    %v823 = vsub.f32 1.0, %v734
    %v825 = vmul.f32 %v823, %v735
    %827 = vrot.lane.b32.xlu0 %v822, 64
    %v828 = vpop.permute.xlu0 %827
    %v830 = vmul.f32 %v734, %v828
    %v831 = vadd.f32 %v825, %v830
    %v833 = vrot.slane %v831, 4
    %v834 = vsel %vm117, %v833, 0
    %836 = vmatprep.subr.mxu0 0.0
    %837 = vmatpush1.msra.mxu0 %v290
    %838 = vmatprep.subr.mxu0 0.0
    %839 = vmatpush1.msra.mxu0 %v291
    %840 = vmatprep.subr.mxu0 0.0
    %841 = vmatpush1.msra.mxu0 %v292
    %842 = vmatprep.subr.mxu0 0.0
    %843 = vmatpush1.msra.mxu0 %v293
    %844 = vmatprep.subr.mxu0 0.0
    %845 = vmatpush1.msra.mxu0 0.0
    %846 = vmatprep.subr.mxu0 0.0
    %847 = vmatpush1.msra.mxu0 0.0
    %848 = vmatprep.subr.mxu0 0.0
    %849 = vmatpush1.msra.mxu0 0.0
    %850 = vmatprep.subr.mxu0 0.0
    %851 = vmatpush1.msra.mxu0 0.0
    %852 = vmatprep.subr.mxu0 0.0
    %853 = vmatpush1.msra.mxu0 0.0
    %854 = vmatprep.subr.mxu0 0.0
    %855 = vmatpush1.msra.mxu0 0.0
    %856 = vmatprep.subr.mxu0 0.0
    %857 = vmatpush1.msra.mxu0 0.0
    %858 = vmatprep.subr.mxu0 0.0
    %859 = vmatpush1.msra.mxu0 0.0
    %860 = vmatprep.subr.mxu0 0.0
    %861 = vmatpush1.msra.mxu0 0.0
    %862 = vmatprep.subr.mxu0 0.0
    %863 = vmatpush1.msra.mxu0 0.0
    %864 = vmatprep.subr.mxu0 0.0
    %865 = vmatpush1.msra.mxu0 0.0
    %866 = vmatprep.subr.mxu0 0.0
    %867 = vmatpush1.msra.mxu0 0.0
    %868 = vmatprep.subr.mxu0 0.0
    %869 = vmatpush1.msra.mxu0 0.0
    %870 = vmatprep.subr.mxu0 0.0
    %871 = vmatpush1.msra.mxu0 0.0
    %872 = vmatprep.subr.mxu0 0.0
    %873 = vmatpush1.msra.mxu0 0.0
    %874 = vmatprep.subr.mxu0 0.0
    %875 = vmatpush1.msra.mxu0 0.0
    %876 = vmatprep.subr.mxu0 0.0
    %877 = vmatpush1.msra.mxu0 0.0
    %878 = vmatprep.subr.mxu0 0.0
    %879 = vmatpush1.msra.mxu0 0.0
    %880 = vmatprep.subr.mxu0 0.0
    %881 = vmatpush1.msra.mxu0 0.0
    %882 = vmatprep.subr.mxu0 0.0
    %883 = vmatpush1.msra.mxu0 0.0
    %884 = vmatprep.subr.mxu0 0.0
    %885 = vmatpush1.msra.mxu0 0.0
    %886 = vmatprep.subr.mxu0 0.0
    %887 = vmatpush1.msra.mxu0 0.0
    %888 = vmatprep.subr.mxu0 0.0
    %889 = vmatpush1.msra.mxu0 0.0
    %890 = vmatprep.subr.mxu0 0.0
    %891 = vmatpush1.msra.mxu0 0.0
    %892 = vmatprep.subr.mxu0 0.0
    %893 = vmatpush1.msra.mxu0 0.0
    %894 = vmatprep.subr.mxu0 0.0
    %895 = vmatpush1.msra.mxu0 0.0
    %896 = vmatprep.subr.mxu0 0.0
    %897 = vmatpush1.msra.mxu0 0.0
    %898 = vmatprep.subr.mxu0 0.0
    %899 = vmatpush1.msra.mxu0 0.0
    %900 = vmatprep.mubr.f32.mxu0 0.0
    %901 = vmatmul.mubr.f32.gmra.mrb[0].mxu0 %v834
    %v902 = vpop.f32.mrb[0].mxu0
    %v903 = vadd.f32 0.0, %v902
    %v904 = vpop.f32.mrb[0].mxu0
    %905 = vdwg.mxu0
    %v907 = vrot.slane %v903, 2
    %v909 = vadd.f32 %v287, %v907
    %v910 = vxor.u32 %v909, 2147483648
    %v911 = vmul.f32 %v910, 1.442695
    %v912 = vpow.pop %v911
    %v913 = vadd.f32 %v912, 1.0
    %v914 = vrcp.pop %v913
    %v915 = vmul.f32 1.0, %v914
    %v916 = vrot.slane %v831, 6
    %917 = vrot.lane.b32.xlu0 %v916, 32
    %v918 = vpop.permute.xlu0 %917
    %v920 = vmul.f32 %v915, %v918
    %v922 = vrot.slane %v920, 6
    %923 = vrot.lane.b32.xlu0 %v922, 96
    %v924 = vpop.permute.xlu0 %923
    %v925 = vsel %vm117, %v924, 0
    %927 = vmatprep.subr.mxu0 0.0
    %928 = vmatpush1.msra.mxu0 %v378
    %929 = vmatprep.subr.mxu0 0.0
    %930 = vmatpush1.msra.mxu0 %v379
    %931 = vmatprep.subr.mxu0 0.0
    %932 = vmatpush1.msra.mxu0 %v380
    %933 = vmatprep.subr.mxu0 0.0
    %934 = vmatpush1.msra.mxu0 %v381
    %935 = vmatprep.subr.mxu0 0.0
    %936 = vmatpush1.msra.mxu0 0.0
    %937 = vmatprep.subr.mxu0 0.0
    %938 = vmatpush1.msra.mxu0 0.0
    %939 = vmatprep.subr.mxu0 0.0
    %940 = vmatpush1.msra.mxu0 0.0
    %941 = vmatprep.subr.mxu0 0.0
    %942 = vmatpush1.msra.mxu0 0.0
    %943 = vmatprep.subr.mxu0 0.0
    %944 = vmatpush1.msra.mxu0 0.0
    %945 = vmatprep.subr.mxu0 0.0
    %946 = vmatpush1.msra.mxu0 0.0
    %947 = vmatprep.subr.mxu0 0.0
    %948 = vmatpush1.msra.mxu0 0.0
    %949 = vmatprep.subr.mxu0 0.0
    %950 = vmatpush1.msra.mxu0 0.0
    %951 = vmatprep.subr.mxu0 0.0
    %952 = vmatpush1.msra.mxu0 0.0
    %953 = vmatprep.subr.mxu0 0.0
    %954 = vmatpush1.msra.mxu0 0.0
    %955 = vmatprep.subr.mxu0 0.0
    %956 = vmatpush1.msra.mxu0 0.0
    %957 = vmatprep.subr.mxu0 0.0
    %958 = vmatpush1.msra.mxu0 0.0
    %959 = vmatprep.subr.mxu0 0.0
    %960 = vmatpush1.msra.mxu0 0.0
    %961 = vmatprep.subr.mxu0 0.0
    %962 = vmatpush1.msra.mxu0 0.0
    %963 = vmatprep.subr.mxu0 0.0
    %964 = vmatpush1.msra.mxu0 0.0
    %965 = vmatprep.subr.mxu0 0.0
    %966 = vmatpush1.msra.mxu0 0.0
    %967 = vmatprep.subr.mxu0 0.0
    %968 = vmatpush1.msra.mxu0 0.0
    %969 = vmatprep.subr.mxu0 0.0
    %970 = vmatpush1.msra.mxu0 0.0
    %971 = vmatprep.subr.mxu0 0.0
    %972 = vmatpush1.msra.mxu0 0.0
    %973 = vmatprep.subr.mxu0 0.0
    %974 = vmatpush1.msra.mxu0 0.0
    %975 = vmatprep.subr.mxu0 0.0
    %976 = vmatpush1.msra.mxu0 0.0
    %977 = vmatprep.subr.mxu0 0.0
    %978 = vmatpush1.msra.mxu0 0.0
    %979 = vmatprep.subr.mxu0 0.0
    %980 = vmatpush1.msra.mxu0 0.0
    %981 = vmatprep.subr.mxu0 0.0
    %982 = vmatpush1.msra.mxu0 0.0
    %983 = vmatprep.subr.mxu0 0.0
    %984 = vmatpush1.msra.mxu0 0.0
    %985 = vmatprep.subr.mxu0 0.0
    %986 = vmatpush1.msra.mxu0 0.0
    %987 = vmatprep.subr.mxu0 0.0
    %988 = vmatpush1.msra.mxu0 0.0
    %989 = vmatprep.subr.mxu0 0.0
    %990 = vmatpush1.msra.mxu0 0.0
    %991 = vmatprep.mubr.f32.mxu0 0.0
    %992 = vmatmul.mubr.f32.gmra.mrb[0].mxu0 %v925
    %v993 = vpop.f32.mrb[0].mxu0
    %v994 = vadd.f32 0.0, %v993
    %v995 = vpop.f32.mrb[0].mxu0
    %996 = vdwg.mxu0
    %v998 = vrot.slane %v994, 2
    %999 = vrot.lane.b32.xlu0 %v998, 64
    %v1000 = vpop.permute.xlu0 %999
    %v1002 = vadd.f32 %v287, %v1000
    %v1003 = vtanh.pop %v1002
    %v1004 = vsub.f32 1.0, %v915
    %v1006 = vmul.f32 %v1004, %v916
    %1008 = vrot.lane.b32.xlu0 %v1003, 64
    %v1009 = vpop.permute.xlu0 %1008
    %v1011 = vmul.f32 %v915, %v1009
    %v1012 = vadd.f32 %v1006, %v1011
    %v1014 = vrot.slane %v1012, 6
    %v1015 = vsel %vm117, %v1014, 0
    %1017 = vmatprep.subr.mxu0 0.0
    %1018 = vmatpush1.msra.mxu0 %v290
    %1019 = vmatprep.subr.mxu0 0.0
    %1020 = vmatpush1.msra.mxu0 %v291
    %1021 = vmatprep.subr.mxu0 0.0
    %1022 = vmatpush1.msra.mxu0 %v292
    %1023 = vmatprep.subr.mxu0 0.0
    %1024 = vmatpush1.msra.mxu0 %v293
    %1025 = vmatprep.subr.mxu0 0.0
    %1026 = vmatpush1.msra.mxu0 0.0
    %1027 = vmatprep.subr.mxu0 0.0
    %1028 = vmatpush1.msra.mxu0 0.0
    %1029 = vmatprep.subr.mxu0 0.0
    %1030 = vmatpush1.msra.mxu0 0.0
    %1031 = vmatprep.subr.mxu0 0.0
    %1032 = vmatpush1.msra.mxu0 0.0
    %1033 = vmatprep.subr.mxu0 0.0
    %1034 = vmatpush1.msra.mxu0 0.0
    %1035 = vmatprep.subr.mxu0 0.0
    %1036 = vmatpush1.msra.mxu0 0.0
    %1037 = vmatprep.subr.mxu0 0.0
    %1038 = vmatpush1.msra.mxu0 0.0
    %1039 = vmatprep.subr.mxu0 0.0
    %1040 = vmatpush1.msra.mxu0 0.0
    %1041 = vmatprep.subr.mxu0 0.0
    %1042 = vmatpush1.msra.mxu0 0.0
    %1043 = vmatprep.subr.mxu0 0.0
    %1044 = vmatpush1.msra.mxu0 0.0
    %1045 = vmatprep.subr.mxu0 0.0
    %1046 = vmatpush1.msra.mxu0 0.0
    %1047 = vmatprep.subr.mxu0 0.0
    %1048 = vmatpush1.msra.mxu0 0.0
    %1049 = vmatprep.subr.mxu0 0.0
    %1050 = vmatpush1.msra.mxu0 0.0
    %1051 = vmatprep.subr.mxu0 0.0
    %1052 = vmatpush1.msra.mxu0 0.0
    %1053 = vmatprep.subr.mxu0 0.0
    %1054 = vmatpush1.msra.mxu0 0.0
    %1055 = vmatprep.subr.mxu0 0.0
    %1056 = vmatpush1.msra.mxu0 0.0
    %1057 = vmatprep.subr.mxu0 0.0
    %1058 = vmatpush1.msra.mxu0 0.0
    %1059 = vmatprep.subr.mxu0 0.0
    %1060 = vmatpush1.msra.mxu0 0.0
    %1061 = vmatprep.subr.mxu0 0.0
    %1062 = vmatpush1.msra.mxu0 0.0
    %1063 = vmatprep.subr.mxu0 0.0
    %1064 = vmatpush1.msra.mxu0 0.0
    %1065 = vmatprep.subr.mxu0 0.0
    %1066 = vmatpush1.msra.mxu0 0.0
    %1067 = vmatprep.subr.mxu0 0.0
    %1068 = vmatpush1.msra.mxu0 0.0
    %1069 = vmatprep.subr.mxu0 0.0
    %1070 = vmatpush1.msra.mxu0 0.0
    %1071 = vmatprep.subr.mxu0 0.0
    %1072 = vmatpush1.msra.mxu0 0.0
    %1073 = vmatprep.subr.mxu0 0.0
    %1074 = vmatpush1.msra.mxu0 0.0
    %1075 = vmatprep.subr.mxu0 0.0
    %1076 = vmatpush1.msra.mxu0 0.0
    %1077 = vmatprep.subr.mxu0 0.0
    %1078 = vmatpush1.msra.mxu0 0.0
    %1079 = vmatprep.subr.mxu0 0.0
    %1080 = vmatpush1.msra.mxu0 0.0
    %1081 = vmatprep.mubr.f32.mxu0 0.0
    %1082 = vmatmul.mubr.f32.gmra.mrb[0].mxu0 %v1015
    %v1083 = vpop.f32.mrb[0].mxu0
    %v1084 = vadd.f32 0.0, %v1083
    %v1085 = vpop.f32.mrb[0].mxu0
    %1086 = vdwg.mxu0
    %v1087 = vadd.f32 %v288, %v1084
    %v1088 = vxor.u32 %v1087, 2147483648
    %v1089 = vmul.f32 %v1088, 1.442695
    %v1090 = vpow.pop %v1089
    %v1091 = vadd.f32 %v1090, 1.0
    %v1092 = vrcp.pop %v1091
    %v1093 = vmul.f32 1.0, %v1092
    %1094 = vrot.lane.b32.xlu0 %v1014, 32
    %v1095 = vpop.permute.xlu0 %1094
    %v1097 = vmul.f32 %v1093, %v1095
    %1099 = vrot.lane.b32.xlu0 %v1097, 96
    %v1100 = vpop.permute.xlu0 %1099
    %v1101 = vsel %vm117, %v1100, 0
    %1103 = vmatprep.subr.mxu0 0.0
    %1104 = vmatpush1.msra.mxu0 %v378
    %1105 = vmatprep.subr.mxu0 0.0
    %1106 = vmatpush1.msra.mxu0 %v379
    %1107 = vmatprep.subr.mxu0 0.0
    %1108 = vmatpush1.msra.mxu0 %v380
    %1109 = vmatprep.subr.mxu0 0.0
    %1110 = vmatpush1.msra.mxu0 %v381
    %1111 = vmatprep.subr.mxu0 0.0
    %1112 = vmatpush1.msra.mxu0 0.0
    %1113 = vmatprep.subr.mxu0 0.0
    %1114 = vmatpush1.msra.mxu0 0.0
    %1115 = vmatprep.subr.mxu0 0.0
    %1116 = vmatpush1.msra.mxu0 0.0
    %1117 = vmatprep.subr.mxu0 0.0
    %1118 = vmatpush1.msra.mxu0 0.0
    %1119 = vmatprep.subr.mxu0 0.0
    %1120 = vmatpush1.msra.mxu0 0.0
    %1121 = vmatprep.subr.mxu0 0.0
    %1122 = vmatpush1.msra.mxu0 0.0
    %1123 = vmatprep.subr.mxu0 0.0
    %1124 = vmatpush1.msra.mxu0 0.0
    %1125 = vmatprep.subr.mxu0 0.0
    %1126 = vmatpush1.msra.mxu0 0.0
    %1127 = vmatprep.subr.mxu0 0.0
    %1128 = vmatpush1.msra.mxu0 0.0
    %1129 = vmatprep.subr.mxu0 0.0
    %1130 = vmatpush1.msra.mxu0 0.0
    %1131 = vmatprep.subr.mxu0 0.0
    %1132 = vmatpush1.msra.mxu0 0.0
    %1133 = vmatprep.subr.mxu0 0.0
    %1134 = vmatpush1.msra.mxu0 0.0
    %1135 = vmatprep.subr.mxu0 0.0
    %1136 = vmatpush1.msra.mxu0 0.0
    %1137 = vmatprep.subr.mxu0 0.0
    %1138 = vmatpush1.msra.mxu0 0.0
    %1139 = vmatprep.subr.mxu0 0.0
    %1140 = vmatpush1.msra.mxu0 0.0
    %1141 = vmatprep.subr.mxu0 0.0
    %1142 = vmatpush1.msra.mxu0 0.0
    %1143 = vmatprep.subr.mxu0 0.0
    %1144 = vmatpush1.msra.mxu0 0.0
    %1145 = vmatprep.subr.mxu0 0.0
    %1146 = vmatpush1.msra.mxu0 0.0
    %1147 = vmatprep.subr.mxu0 0.0
    %1148 = vmatpush1.msra.mxu0 0.0
    %1149 = vmatprep.subr.mxu0 0.0
    %1150 = vmatpush1.msra.mxu0 0.0
    %1151 = vmatprep.subr.mxu0 0.0
    %1152 = vmatpush1.msra.mxu0 0.0
    %1153 = vmatprep.subr.mxu0 0.0
    %1154 = vmatpush1.msra.mxu0 0.0
    %1155 = vmatprep.subr.mxu0 0.0
    %1156 = vmatpush1.msra.mxu0 0.0
    %1157 = vmatprep.subr.mxu0 0.0
    %1158 = vmatpush1.msra.mxu0 0.0
    %1159 = vmatprep.subr.mxu0 0.0
    %1160 = vmatpush1.msra.mxu0 0.0
    %1161 = vmatprep.subr.mxu0 0.0
    %1162 = vmatpush1.msra.mxu0 0.0
    %1163 = vmatprep.subr.mxu0 0.0
    %1164 = vmatpush1.msra.mxu0 0.0
    %1165 = vmatprep.subr.mxu0 0.0
    %1166 = vmatpush1.msra.mxu0 0.0
    %1167 = vmatprep.mubr.f32.mxu0 0.0
    %1168 = vmatmul.mubr.f32.gmra.mrb[0].mxu0 %v1101
    %v1169 = vpop.f32.mrb[0].mxu0
    %v1170 = vadd.f32 0.0, %v1169
    %v1171 = vpop.f32.mrb[0].mxu0
    %1172 = vdwg.mxu0
    %1174 = vrot.lane.b32.xlu0 %v1170, 64
    %v1175 = vpop.permute.xlu0 %1174
    %v1177 = vadd.f32 %v288, %v1175
    %v1178 = vtanh.pop %v1177
    %v1179 = vsub.f32 1.0, %v1093
    %v1181 = vmul.f32 %v1179, %v1014
    %1183 = vrot.lane.b32.xlu0 %v1178, 64
    %v1184 = vpop.permute.xlu0 %1183
    %v1186 = vmul.f32 %v1093, %v1184
    %v1187 = vadd.f32 %v1181, %v1186
    %v1189 = vsel %vm117, %v1187, 0
    %1191 = vmatprep.subr.mxu0 0.0
    %1192 = vmatpush1.msra.mxu0 %v290
    %1193 = vmatprep.subr.mxu0 0.0
    %1194 = vmatpush1.msra.mxu0 %v291
    %1195 = vmatprep.subr.mxu0 0.0
    %1196 = vmatpush1.msra.mxu0 %v292
    %1197 = vmatprep.subr.mxu0 0.0
    %1198 = vmatpush1.msra.mxu0 %v293
    %1199 = vmatprep.subr.mxu0 0.0
    %1200 = vmatpush1.msra.mxu0 0.0
    %1201 = vmatprep.subr.mxu0 0.0
    %1202 = vmatpush1.msra.mxu0 0.0
    %1203 = vmatprep.subr.mxu0 0.0
    %1204 = vmatpush1.msra.mxu0 0.0
    %1205 = vmatprep.subr.mxu0 0.0
    %1206 = vmatpush1.msra.mxu0 0.0
    %1207 = vmatprep.subr.mxu0 0.0
    %1208 = vmatpush1.msra.mxu0 0.0
    %1209 = vmatprep.subr.mxu0 0.0
    %1210 = vmatpush1.msra.mxu0 0.0
    %1211 = vmatprep.subr.mxu0 0.0
    %1212 = vmatpush1.msra.mxu0 0.0
    %1213 = vmatprep.subr.mxu0 0.0
    %1214 = vmatpush1.msra.mxu0 0.0
    %1215 = vmatprep.subr.mxu0 0.0
    %1216 = vmatpush1.msra.mxu0 0.0
    %1217 = vmatprep.subr.mxu0 0.0
    %1218 = vmatpush1.msra.mxu0 0.0
    %1219 = vmatprep.subr.mxu0 0.0
    %1220 = vmatpush1.msra.mxu0 0.0
    %1221 = vmatprep.subr.mxu0 0.0
    %1222 = vmatpush1.msra.mxu0 0.0
    %1223 = vmatprep.subr.mxu0 0.0
    %1224 = vmatpush1.msra.mxu0 0.0
    %1225 = vmatprep.subr.mxu0 0.0
    %1226 = vmatpush1.msra.mxu0 0.0
    %1227 = vmatprep.subr.mxu0 0.0
    %1228 = vmatpush1.msra.mxu0 0.0
    %1229 = vmatprep.subr.mxu0 0.0
    %1230 = vmatpush1.msra.mxu0 0.0
    %1231 = vmatprep.subr.mxu0 0.0
    %1232 = vmatpush1.msra.mxu0 0.0
    %1233 = vmatprep.subr.mxu0 0.0
    %1234 = vmatpush1.msra.mxu0 0.0
    %1235 = vmatprep.subr.mxu0 0.0
    %1236 = vmatpush1.msra.mxu0 0.0
    %1237 = vmatprep.subr.mxu0 0.0
    %1238 = vmatpush1.msra.mxu0 0.0
    %1239 = vmatprep.subr.mxu0 0.0
    %1240 = vmatpush1.msra.mxu0 0.0
    %1241 = vmatprep.subr.mxu0 0.0
    %1242 = vmatpush1.msra.mxu0 0.0
    %1243 = vmatprep.subr.mxu0 0.0
    %1244 = vmatpush1.msra.mxu0 0.0
    %1245 = vmatprep.subr.mxu0 0.0
    %1246 = vmatpush1.msra.mxu0 0.0
    %1247 = vmatprep.subr.mxu0 0.0
    %1248 = vmatpush1.msra.mxu0 0.0
    %1249 = vmatprep.subr.mxu0 0.0
    %1250 = vmatpush1.msra.mxu0 0.0
    %1251 = vmatprep.subr.mxu0 0.0
    %1252 = vmatpush1.msra.mxu0 0.0
    %1253 = vmatprep.subr.mxu0 0.0
    %1254 = vmatpush1.msra.mxu0 0.0
    %1255 = vmatprep.mubr.f32.mxu0 0.0
    %1256 = vmatmul.mubr.f32.gmra.mrb[0].mxu0 %v1189
    %v1257 = vpop.f32.mrb[0].mxu0
    %v1258 = vadd.f32 0.0, %v1257
    %v1259 = vpop.f32.mrb[0].mxu0
    %1260 = vdwg.mxu0
    %v1262 = vrot.slane %v1258, 6
    %v1264 = vadd.f32 %v288, %v1262
    %v1265 = vxor.u32 %v1264, 2147483648
    %v1266 = vmul.f32 %v1265, 1.442695
    %v1267 = vpow.pop %v1266
    %v1268 = vadd.f32 %v1267, 1.0
    %v1269 = vrcp.pop %v1268
    %v1270 = vmul.f32 1.0, %v1269
    %v1271 = vrot.slane %v1187, 6
    %1272 = vrot.lane.b32.xlu0 %v1271, 32
    %v1273 = vpop.permute.xlu0 %1272
    %v1275 = vmul.f32 %v1270, %v1273
    %v1277 = vrot.slane %v1275, 2
    %1278 = vrot.lane.b32.xlu0 %v1277, 96
    %v1279 = vpop.permute.xlu0 %1278
    %v1280 = vsel %vm117, %v1279, 0
    %1282 = vmatprep.subr.mxu0 0.0
    %1283 = vmatpush1.msra.mxu0 %v378
    %1284 = vmatprep.subr.mxu0 0.0
    %1285 = vmatpush1.msra.mxu0 %v379
    %1286 = vmatprep.subr.mxu0 0.0
    %1287 = vmatpush1.msra.mxu0 %v380
    %1288 = vmatprep.subr.mxu0 0.0
    %1289 = vmatpush1.msra.mxu0 %v381
    %1290 = vmatprep.subr.mxu0 0.0
    %1291 = vmatpush1.msra.mxu0 0.0
    %1292 = vmatprep.subr.mxu0 0.0
    %1293 = vmatpush1.msra.mxu0 0.0
    %1294 = vmatprep.subr.mxu0 0.0
    %1295 = vmatpush1.msra.mxu0 0.0
    %1296 = vmatprep.subr.mxu0 0.0
    %1297 = vmatpush1.msra.mxu0 0.0
    %1298 = vmatprep.subr.mxu0 0.0
    %1299 = vmatpush1.msra.mxu0 0.0
    %1300 = vmatprep.subr.mxu0 0.0
    %1301 = vmatpush1.msra.mxu0 0.0
    %1302 = vmatprep.subr.mxu0 0.0
    %1303 = vmatpush1.msra.mxu0 0.0
    %1304 = vmatprep.subr.mxu0 0.0
    %1305 = vmatpush1.msra.mxu0 0.0
    %1306 = vmatprep.subr.mxu0 0.0
    %1307 = vmatpush1.msra.mxu0 0.0
    %1308 = vmatprep.subr.mxu0 0.0
    %1309 = vmatpush1.msra.mxu0 0.0
    %1310 = vmatprep.subr.mxu0 0.0
    %1311 = vmatpush1.msra.mxu0 0.0
    %1312 = vmatprep.subr.mxu0 0.0
    %1313 = vmatpush1.msra.mxu0 0.0
    %1314 = vmatprep.subr.mxu0 0.0
    %1315 = vmatpush1.msra.mxu0 0.0
    %1316 = vmatprep.subr.mxu0 0.0
    %1317 = vmatpush1.msra.mxu0 0.0
    %1318 = vmatprep.subr.mxu0 0.0
    %1319 = vmatpush1.msra.mxu0 0.0
    %1320 = vmatprep.subr.mxu0 0.0
    %1321 = vmatpush1.msra.mxu0 0.0
    %1322 = vmatprep.subr.mxu0 0.0
    %1323 = vmatpush1.msra.mxu0 0.0
    %1324 = vmatprep.subr.mxu0 0.0
    %1325 = vmatpush1.msra.mxu0 0.0
    %1326 = vmatprep.subr.mxu0 0.0
    %1327 = vmatpush1.msra.mxu0 0.0
    %1328 = vmatprep.subr.mxu0 0.0
    %1329 = vmatpush1.msra.mxu0 0.0
    %1330 = vmatprep.subr.mxu0 0.0
    %1331 = vmatpush1.msra.mxu0 0.0
    %1332 = vmatprep.subr.mxu0 0.0
    %1333 = vmatpush1.msra.mxu0 0.0
    %1334 = vmatprep.subr.mxu0 0.0
    %1335 = vmatpush1.msra.mxu0 0.0
    %1336 = vmatprep.subr.mxu0 0.0
    %1337 = vmatpush1.msra.mxu0 0.0
    %1338 = vmatprep.subr.mxu0 0.0
    %1339 = vmatpush1.msra.mxu0 0.0
    %1340 = vmatprep.subr.mxu0 0.0
    %1341 = vmatpush1.msra.mxu0 0.0
    %1342 = vmatprep.subr.mxu0 0.0
    %1343 = vmatpush1.msra.mxu0 0.0
    %1344 = vmatprep.subr.mxu0 0.0
    %1345 = vmatpush1.msra.mxu0 0.0
    %1346 = vmatprep.mubr.f32.mxu0 0.0
    %1347 = vmatmul.mubr.f32.gmra.mrb[0].mxu0 %v1280
    %v1348 = vpop.f32.mrb[0].mxu0
    %v1349 = vadd.f32 0.0, %v1348
    %v1350 = vpop.f32.mrb[0].mxu0
    %1351 = vdwg.mxu0
    %v1353 = vrot.slane %v1349, 6
    %1354 = vrot.lane.b32.xlu0 %v1353, 64
    %v1355 = vpop.permute.xlu0 %1354
    %v1357 = vadd.f32 %v288, %v1355
    %v1358 = vtanh.pop %v1357
    %v1359 = vsub.f32 1.0, %v1270
    %v1361 = vmul.f32 %v1359, %v1271
    %1363 = vrot.lane.b32.xlu0 %v1358, 64
    %v1364 = vpop.permute.xlu0 %1363
    %v1366 = vmul.f32 %v1270, %v1364
    %v1367 = vadd.f32 %v1361, %v1366
    %v1369 = vrot.slane %v1367, 2
    %v1370 = vsel %vm117, %v1369, 0
    %1372 = vmatprep.subr.mxu0 0.0
    %1373 = vmatpush1.msra.mxu0 %v290
    %1374 = vmatprep.subr.mxu0 0.0
    %1375 = vmatpush1.msra.mxu0 %v291
    %1376 = vmatprep.subr.mxu0 0.0
    %1377 = vmatpush1.msra.mxu0 %v292
    %1378 = vmatprep.subr.mxu0 0.0
    %1379 = vmatpush1.msra.mxu0 %v293
    %1380 = vmatprep.subr.mxu0 0.0
    %1381 = vmatpush1.msra.mxu0 0.0
    %1382 = vmatprep.subr.mxu0 0.0
    %1383 = vmatpush1.msra.mxu0 0.0
    %1384 = vmatprep.subr.mxu0 0.0
    %1385 = vmatpush1.msra.mxu0 0.0
    %1386 = vmatprep.subr.mxu0 0.0
    %1387 = vmatpush1.msra.mxu0 0.0
    %1388 = vmatprep.subr.mxu0 0.0
    %1389 = vmatpush1.msra.mxu0 0.0
    %1390 = vmatprep.subr.mxu0 0.0
    %1391 = vmatpush1.msra.mxu0 0.0
    %1392 = vmatprep.subr.mxu0 0.0
    %1393 = vmatpush1.msra.mxu0 0.0
    %1394 = vmatprep.subr.mxu0 0.0
    %1395 = vmatpush1.msra.mxu0 0.0
    %1396 = vmatprep.subr.mxu0 0.0
    %1397 = vmatpush1.msra.mxu0 0.0
    %1398 = vmatprep.subr.mxu0 0.0
    %1399 = vmatpush1.msra.mxu0 0.0
    %1400 = vmatprep.subr.mxu0 0.0
    %1401 = vmatpush1.msra.mxu0 0.0
    %1402 = vmatprep.subr.mxu0 0.0
    %1403 = vmatpush1.msra.mxu0 0.0
    %1404 = vmatprep.subr.mxu0 0.0
    %1405 = vmatpush1.msra.mxu0 0.0
    %1406 = vmatprep.subr.mxu0 0.0
    %1407 = vmatpush1.msra.mxu0 0.0
    %1408 = vmatprep.subr.mxu0 0.0
    %1409 = vmatpush1.msra.mxu0 0.0
    %1410 = vmatprep.subr.mxu0 0.0
    %1411 = vmatpush1.msra.mxu0 0.0
    %1412 = vmatprep.subr.mxu0 0.0
    %1413 = vmatpush1.msra.mxu0 0.0
    %1414 = vmatprep.subr.mxu0 0.0
    %1415 = vmatpush1.msra.mxu0 0.0
    %1416 = vmatprep.subr.mxu0 0.0
    %1417 = vmatpush1.msra.mxu0 0.0
    %1418 = vmatprep.subr.mxu0 0.0
    %1419 = vmatpush1.msra.mxu0 0.0
    %1420 = vmatprep.subr.mxu0 0.0
    %1421 = vmatpush1.msra.mxu0 0.0
    %1422 = vmatprep.subr.mxu0 0.0
    %1423 = vmatpush1.msra.mxu0 0.0
    %1424 = vmatprep.subr.mxu0 0.0
    %1425 = vmatpush1.msra.mxu0 0.0
    %1426 = vmatprep.subr.mxu0 0.0
    %1427 = vmatpush1.msra.mxu0 0.0
    %1428 = vmatprep.subr.mxu0 0.0
    %1429 = vmatpush1.msra.mxu0 0.0
    %1430 = vmatprep.subr.mxu0 0.0
    %1431 = vmatpush1.msra.mxu0 0.0
    %1432 = vmatprep.subr.mxu0 0.0
    %1433 = vmatpush1.msra.mxu0 0.0
    %1434 = vmatprep.subr.mxu0 0.0
    %1435 = vmatpush1.msra.mxu0 0.0
    %1436 = vmatprep.mubr.f32.mxu0 0.0
    %1437 = vmatmul.mubr.f32.gmra.mrb[0].mxu0 %v1370
    %v1438 = vpop.f32.mrb[0].mxu0
    %v1439 = vadd.f32 0.0, %v1438
    %v1440 = vpop.f32.mrb[0].mxu0
    %1441 = vdwg.mxu0
    %v1443 = vrot.slane %v1439, 4
    %v1445 = vadd.f32 %v288, %v1443
    %v1446 = vxor.u32 %v1445, 2147483648
    %v1447 = vmul.f32 %v1446, 1.442695
    %v1448 = vpow.pop %v1447
    %v1449 = vadd.f32 %v1448, 1.0
    %v1450 = vrcp.pop %v1449
    %v1451 = vmul.f32 1.0, %v1450
    %v1452 = vrot.slane %v1367, 6
    %1453 = vrot.lane.b32.xlu0 %v1452, 32
    %v1454 = vpop.permute.xlu0 %1453
    %v1456 = vmul.f32 %v1451, %v1454
    %v1458 = vrot.slane %v1456, 4
    %1459 = vrot.lane.b32.xlu0 %v1458, 96
    %v1460 = vpop.permute.xlu0 %1459
    %v1461 = vsel %vm117, %v1460, 0
    %1463 = vmatprep.subr.mxu0 0.0
    %1464 = vmatpush1.msra.mxu0 %v378
    %1465 = vmatprep.subr.mxu0 0.0
    %1466 = vmatpush1.msra.mxu0 %v379
    %1467 = vmatprep.subr.mxu0 0.0
    %1468 = vmatpush1.msra.mxu0 %v380
    %1469 = vmatprep.subr.mxu0 0.0
    %1470 = vmatpush1.msra.mxu0 %v381
    %1471 = vmatprep.subr.mxu0 0.0
    %1472 = vmatpush1.msra.mxu0 0.0
    %1473 = vmatprep.subr.mxu0 0.0
    %1474 = vmatpush1.msra.mxu0 0.0
    %1475 = vmatprep.subr.mxu0 0.0
    %1476 = vmatpush1.msra.mxu0 0.0
    %1477 = vmatprep.subr.mxu0 0.0
    %1478 = vmatpush1.msra.mxu0 0.0
    %1479 = vmatprep.subr.mxu0 0.0
    %1480 = vmatpush1.msra.mxu0 0.0
    %1481 = vmatprep.subr.mxu0 0.0
    %1482 = vmatpush1.msra.mxu0 0.0
    %1483 = vmatprep.subr.mxu0 0.0
    %1484 = vmatpush1.msra.mxu0 0.0
    %1485 = vmatprep.subr.mxu0 0.0
    %1486 = vmatpush1.msra.mxu0 0.0
    %1487 = vmatprep.subr.mxu0 0.0
    %1488 = vmatpush1.msra.mxu0 0.0
    %1489 = vmatprep.subr.mxu0 0.0
    %1490 = vmatpush1.msra.mxu0 0.0
    %1491 = vmatprep.subr.mxu0 0.0
    %1492 = vmatpush1.msra.mxu0 0.0
    %1493 = vmatprep.subr.mxu0 0.0
    %1494 = vmatpush1.msra.mxu0 0.0
    %1495 = vmatprep.subr.mxu0 0.0
    %1496 = vmatpush1.msra.mxu0 0.0
    %1497 = vmatprep.subr.mxu0 0.0
    %1498 = vmatpush1.msra.mxu0 0.0
    %1499 = vmatprep.subr.mxu0 0.0
    %1500 = vmatpush1.msra.mxu0 0.0
    %1501 = vmatprep.subr.mxu0 0.0
    %1502 = vmatpush1.msra.mxu0 0.0
    %1503 = vmatprep.subr.mxu0 0.0
    %1504 = vmatpush1.msra.mxu0 0.0
    %1505 = vmatprep.subr.mxu0 0.0
    %1506 = vmatpush1.msra.mxu0 0.0
    %1507 = vmatprep.subr.mxu0 0.0
    %1508 = vmatpush1.msra.mxu0 0.0
    %1509 = vmatprep.subr.mxu0 0.0
    %1510 = vmatpush1.msra.mxu0 0.0
    %1511 = vmatprep.subr.mxu0 0.0
    %1512 = vmatpush1.msra.mxu0 0.0
    %1513 = vmatprep.subr.mxu0 0.0
    %1514 = vmatpush1.msra.mxu0 0.0
    %1515 = vmatprep.subr.mxu0 0.0
    %1516 = vmatpush1.msra.mxu0 0.0
    %1517 = vmatprep.subr.mxu0 0.0
    %1518 = vmatpush1.msra.mxu0 0.0
    %1519 = vmatprep.subr.mxu0 0.0
    %1520 = vmatpush1.msra.mxu0 0.0
    %1521 = vmatprep.subr.mxu0 0.0
    %1522 = vmatpush1.msra.mxu0 0.0
    %1523 = vmatprep.subr.mxu0 0.0
    %1524 = vmatpush1.msra.mxu0 0.0
    %1525 = vmatprep.subr.mxu0 0.0
    %1526 = vmatpush1.msra.mxu0 0.0
    %1527 = vmatprep.mubr.f32.mxu0 0.0
    %1528 = vmatmul.mubr.f32.gmra.mrb[0].mxu0 %v1461
    %v1529 = vpop.f32.mrb[0].mxu0
    %v1530 = vadd.f32 0.0, %v1529
    %v1531 = vpop.f32.mrb[0].mxu0
    %1532 = vdwg.mxu0
    %v1534 = vrot.slane %v1530, 4
    %1535 = vrot.lane.b32.xlu0 %v1534, 64
    %v1536 = vpop.permute.xlu0 %1535
    %v1538 = vadd.f32 %v288, %v1536
    %v1539 = vtanh.pop %v1538
    %v1540 = vsub.f32 1.0, %v1451
    %v1542 = vmul.f32 %v1540, %v1452
    %1544 = vrot.lane.b32.xlu0 %v1539, 64
    %v1545 = vpop.permute.xlu0 %1544
    %v1547 = vmul.f32 %v1451, %v1545
    %v1548 = vadd.f32 %v1542, %v1547
    %v1550 = vrot.slane %v1548, 4
    %v1551 = vsel %vm117, %v1550, 0
    %1553 = vmatprep.subr.mxu0 0.0
    %1554 = vmatpush1.msra.mxu0 %v290
    %1555 = vmatprep.subr.mxu0 0.0
    %1556 = vmatpush1.msra.mxu0 %v291
    %1557 = vmatprep.subr.mxu0 0.0
    %1558 = vmatpush1.msra.mxu0 %v292
    %1559 = vmatprep.subr.mxu0 0.0
    %1560 = vmatpush1.msra.mxu0 %v293
    %1561 = vmatprep.subr.mxu0 0.0
    %1562 = vmatpush1.msra.mxu0 0.0
    %1563 = vmatprep.subr.mxu0 0.0
    %1564 = vmatpush1.msra.mxu0 0.0
    %1565 = vmatprep.subr.mxu0 0.0
    %1566 = vmatpush1.msra.mxu0 0.0
    %1567 = vmatprep.subr.mxu0 0.0
    %1568 = vmatpush1.msra.mxu0 0.0
    %1569 = vmatprep.subr.mxu0 0.0
    %1570 = vmatpush1.msra.mxu0 0.0
    %1571 = vmatprep.subr.mxu0 0.0
    %1572 = vmatpush1.msra.mxu0 0.0
    %1573 = vmatprep.subr.mxu0 0.0
    %1574 = vmatpush1.msra.mxu0 0.0
    %1575 = vmatprep.subr.mxu0 0.0
    %1576 = vmatpush1.msra.mxu0 0.0
    %1577 = vmatprep.subr.mxu0 0.0
    %1578 = vmatpush1.msra.mxu0 0.0
    %1579 = vmatprep.subr.mxu0 0.0
    %1580 = vmatpush1.msra.mxu0 0.0
    %1581 = vmatprep.subr.mxu0 0.0
    %1582 = vmatpush1.msra.mxu0 0.0
    %1583 = vmatprep.subr.mxu0 0.0
    %1584 = vmatpush1.msra.mxu0 0.0
    %1585 = vmatprep.subr.mxu0 0.0
    %1586 = vmatpush1.msra.mxu0 0.0
    %1587 = vmatprep.subr.mxu0 0.0
    %1588 = vmatpush1.msra.mxu0 0.0
    %1589 = vmatprep.subr.mxu0 0.0
    %1590 = vmatpush1.msra.mxu0 0.0
    %1591 = vmatprep.subr.mxu0 0.0
    %1592 = vmatpush1.msra.mxu0 0.0
    %1593 = vmatprep.subr.mxu0 0.0
    %1594 = vmatpush1.msra.mxu0 0.0
    %1595 = vmatprep.subr.mxu0 0.0
    %1596 = vmatpush1.msra.mxu0 0.0
    %1597 = vmatprep.subr.mxu0 0.0
    %1598 = vmatpush1.msra.mxu0 0.0
    %1599 = vmatprep.subr.mxu0 0.0
    %1600 = vmatpush1.msra.mxu0 0.0
    %1601 = vmatprep.subr.mxu0 0.0
    %1602 = vmatpush1.msra.mxu0 0.0
    %1603 = vmatprep.subr.mxu0 0.0
    %1604 = vmatpush1.msra.mxu0 0.0
    %1605 = vmatprep.subr.mxu0 0.0
    %1606 = vmatpush1.msra.mxu0 0.0
    %1607 = vmatprep.subr.mxu0 0.0
    %1608 = vmatpush1.msra.mxu0 0.0
    %1609 = vmatprep.subr.mxu0 0.0
    %1610 = vmatpush1.msra.mxu0 0.0
    %1611 = vmatprep.subr.mxu0 0.0
    %1612 = vmatpush1.msra.mxu0 0.0
    %1613 = vmatprep.subr.mxu0 0.0
    %1614 = vmatpush1.msra.mxu0 0.0
    %1615 = vmatprep.subr.mxu0 0.0
    %1616 = vmatpush1.msra.mxu0 0.0
    %1617 = vmatprep.mubr.f32.mxu0 0.0
    %1618 = vmatmul.mubr.f32.gmra.mrb[0].mxu0 %v1551
    %v1619 = vpop.f32.mrb[0].mxu0
    %v1620 = vadd.f32 0.0, %v1619
    %v1621 = vpop.f32.mrb[0].mxu0
    %1622 = vdwg.mxu0
    %v1624 = vrot.slane %v1620, 2
    %v1626 = vadd.f32 %v288, %v1624
    %v1627 = vxor.u32 %v1626, 2147483648
    %v1628 = vmul.f32 %v1627, 1.442695
    %v1629 = vpow.pop %v1628
    %v1630 = vadd.f32 %v1629, 1.0
    %v1631 = vrcp.pop %v1630
    %v1632 = vmul.f32 1.0, %v1631
    %v1633 = vrot.slane %v1548, 6
    %1634 = vrot.lane.b32.xlu0 %v1633, 32
    %v1635 = vpop.permute.xlu0 %1634
    %v1637 = vmul.f32 %v1632, %v1635
    %v1639 = vrot.slane %v1637, 6
    %1640 = vrot.lane.b32.xlu0 %v1639, 96
    %v1641 = vpop.permute.xlu0 %1640
    %v1642 = vsel %vm117, %v1641, 0
    %1644 = vmatprep.subr.mxu0 0.0
    %1645 = vmatpush1.msra.mxu0 %v378
    %1646 = vmatprep.subr.mxu0 0.0
    %1647 = vmatpush1.msra.mxu0 %v379
    %1648 = vmatprep.subr.mxu0 0.0
    %1649 = vmatpush1.msra.mxu0 %v380
    %1650 = vmatprep.subr.mxu0 0.0
    %1651 = vmatpush1.msra.mxu0 %v381
    %1652 = vmatprep.subr.mxu0 0.0
    %1653 = vmatpush1.msra.mxu0 0.0
    %1654 = vmatprep.subr.mxu0 0.0
    %1655 = vmatpush1.msra.mxu0 0.0
    %1656 = vmatprep.subr.mxu0 0.0
    %1657 = vmatpush1.msra.mxu0 0.0
    %1658 = vmatprep.subr.mxu0 0.0
    %1659 = vmatpush1.msra.mxu0 0.0
    %1660 = vmatprep.subr.mxu0 0.0
    %1661 = vmatpush1.msra.mxu0 0.0
    %1662 = vmatprep.subr.mxu0 0.0
    %1663 = vmatpush1.msra.mxu0 0.0
    %1664 = vmatprep.subr.mxu0 0.0
    %1665 = vmatpush1.msra.mxu0 0.0
    %1666 = vmatprep.subr.mxu0 0.0
    %1667 = vmatpush1.msra.mxu0 0.0
    %1668 = vmatprep.subr.mxu0 0.0
    %1669 = vmatpush1.msra.mxu0 0.0
    %1670 = vmatprep.subr.mxu0 0.0
    %1671 = vmatpush1.msra.mxu0 0.0
    %1672 = vmatprep.subr.mxu0 0.0
    %1673 = vmatpush1.msra.mxu0 0.0
    %1674 = vmatprep.subr.mxu0 0.0
    %1675 = vmatpush1.msra.mxu0 0.0
    %1676 = vmatprep.subr.mxu0 0.0
    %1677 = vmatpush1.msra.mxu0 0.0
    %1678 = vmatprep.subr.mxu0 0.0
    %1679 = vmatpush1.msra.mxu0 0.0
    %1680 = vmatprep.subr.mxu0 0.0
    %1681 = vmatpush1.msra.mxu0 0.0
    %1682 = vmatprep.subr.mxu0 0.0
    %1683 = vmatpush1.msra.mxu0 0.0
    %1684 = vmatprep.subr.mxu0 0.0
    %1685 = vmatpush1.msra.mxu0 0.0
    %1686 = vmatprep.subr.mxu0 0.0
    %1687 = vmatpush1.msra.mxu0 0.0
    %1688 = vmatprep.subr.mxu0 0.0
    %1689 = vmatpush1.msra.mxu0 0.0
    %1690 = vmatprep.subr.mxu0 0.0
    %1691 = vmatpush1.msra.mxu0 0.0
    %1692 = vmatprep.subr.mxu0 0.0
    %1693 = vmatpush1.msra.mxu0 0.0
    %1694 = vmatprep.subr.mxu0 0.0
    %1695 = vmatpush1.msra.mxu0 0.0
    %1696 = vmatprep.subr.mxu0 0.0
    %1697 = vmatpush1.msra.mxu0 0.0
    %1698 = vmatprep.subr.mxu0 0.0
    %1699 = vmatpush1.msra.mxu0 0.0
    %1700 = vmatprep.subr.mxu0 0.0
    %1701 = vmatpush1.msra.mxu0 0.0
    %1702 = vmatprep.subr.mxu0 0.0
    %1703 = vmatpush1.msra.mxu0 0.0
    %1704 = vmatprep.subr.mxu0 0.0
    %1705 = vmatpush1.msra.mxu0 0.0
    %1706 = vmatprep.subr.mxu0 0.0
    %1707 = vmatpush1.msra.mxu0 0.0
    %1708 = vmatprep.mubr.f32.mxu0 0.0
    %1709 = vmatmul.mubr.f32.gmra.mrb[0].mxu0 %v1642
    %v1710 = vpop.f32.mrb[0].mxu0
    %v1711 = vadd.f32 0.0, %v1710
    %v1712 = vpop.f32.mrb[0].mxu0
    %1713 = vdwg.mxu0
    %v1715 = vrot.slane %v1711, 2
    %1716 = vrot.lane.b32.xlu0 %v1715, 64
    %v1717 = vpop.permute.xlu0 %1716
    %v1719 = vadd.f32 %v288, %v1717
    %v1720 = vtanh.pop %v1719
    %v1721 = vsub.f32 1.0, %v1632
    %v1723 = vmul.f32 %v1721, %v1633
    %1725 = vrot.lane.b32.xlu0 %v1720, 64
    %v1726 = vpop.permute.xlu0 %1725
    %v1728 = vmul.f32 %v1632, %v1726
    %v1729 = vadd.f32 %v1723, %v1728
    %vm1730 = vcmask 1041408
    %v1731 = vsel %vm1730, %v470, %v650
    %vm1732 = vcmask 1043456
    %v1733 = vsel %vm1732, %v1731, %v831
    %vm1734 = vcmask 1045504
    %v1735 = vsel %vm1734, %v1733, %v1012
    %v1736 = vsel %vm1730, %v1187, %v1367
    %v1737 = vsel %vm1732, %v1736, %v1548
    %v1738 = vsel %vm1734, %v1737, %v1729
    %1739 = vst.msk [vmem:[#allocation12] sm:$0xff] %vm117, %v1735
    %1740 = vst.msk [vmem:[#allocation12 + $0x8] sm:$0xff] %vm117, %v1738
    %v1741 = vld [vmem:[%s8] sm:$0xff]
    %v1742 = vld [vmem:[%s8 + $0x8] sm:$0xff]
    %v1743 = vld [vmem:[%s8 + $0x10] sm:$0xff]
    %v1744 = vld [vmem:[%s8 + $0x18] sm:$0xff]
    %v1745 = vld [vmem:[%s9] sm:$0x1]
    %v1747 = vlaneseq
    %v1748 = vshrl.u32 %v1747, 7
    %v1749 = vsub.s32 0, %v1748
    %v1750 = vrot.slane %v1745, %v1749
    %v1753 = vrot.slane %v1729, 6
    %v1754 = vsel %vm117, %v1753, 0
    %1756 = vmatprep.subr.mxu0 0.0
    %1757 = vmatpush1.msra.mxu0 %v1741
    %1758 = vmatprep.subr.mxu0 0.0
    %1759 = vmatpush1.msra.mxu0 %v1742
    %1760 = vmatprep.subr.mxu0 0.0
    %1761 = vmatpush1.msra.mxu0 %v1743
    %1762 = vmatprep.subr.mxu0 0.0
    %1763 = vmatpush1.msra.mxu0 %v1744
    %1764 = vmatprep.subr.mxu0 0.0
    %1765 = vmatpush1.msra.mxu0 0.0
    %1766 = vmatprep.subr.mxu0 0.0
    %1767 = vmatpush1.msra.mxu0 0.0
    %1768 = vmatprep.subr.mxu0 0.0
    %1769 = vmatpush1.msra.mxu0 0.0
    %1770 = vmatprep.subr.mxu0 0.0
    %1771 = vmatpush1.msra.mxu0 0.0
    %1772 = vmatprep.subr.mxu0 0.0
    %1773 = vmatpush1.msra.mxu0 0.0
    %1774 = vmatprep.subr.mxu0 0.0
    %1775 = vmatpush1.msra.mxu0 0.0
    %1776 = vmatprep.subr.mxu0 0.0
    %1777 = vmatpush1.msra.mxu0 0.0
    %1778 = vmatprep.subr.mxu0 0.0
    %1779 = vmatpush1.msra.mxu0 0.0
    %1780 = vmatprep.subr.mxu0 0.0
    %1781 = vmatpush1.msra.mxu0 0.0
    %1782 = vmatprep.subr.mxu0 0.0
    %1783 = vmatpush1.msra.mxu0 0.0
    %1784 = vmatprep.subr.mxu0 0.0
    %1785 = vmatpush1.msra.mxu0 0.0
    %1786 = vmatprep.subr.mxu0 0.0
    %1787 = vmatpush1.msra.mxu0 0.0
    %1788 = vmatprep.subr.mxu0 0.0
    %1789 = vmatpush1.msra.mxu0 0.0
    %1790 = vmatprep.subr.mxu0 0.0
    %1791 = vmatpush1.msra.mxu0 0.0
    %1792 = vmatprep.subr.mxu0 0.0
    %1793 = vmatpush1.msra.mxu0 0.0
    %1794 = vmatprep.subr.mxu0 0.0
    %1795 = vmatpush1.msra.mxu0 0.0
    %1796 = vmatprep.subr.mxu0 0.0
    %1797 = vmatpush1.msra.mxu0 0.0
    %1798 = vmatprep.subr.mxu0 0.0
    %1799 = vmatpush1.msra.mxu0 0.0
    %1800 = vmatprep.subr.mxu0 0.0
    %1801 = vmatpush1.msra.mxu0 0.0
    %1802 = vmatprep.subr.mxu0 0.0
    %1803 = vmatpush1.msra.mxu0 0.0
    %1804 = vmatprep.subr.mxu0 0.0
    %1805 = vmatpush1.msra.mxu0 0.0
    %1806 = vmatprep.subr.mxu0 0.0
    %1807 = vmatpush1.msra.mxu0 0.0
    %1808 = vmatprep.subr.mxu0 0.0
    %1809 = vmatpush1.msra.mxu0 0.0
    %1810 = vmatprep.subr.mxu0 0.0
    %1811 = vmatpush1.msra.mxu0 0.0
    %1812 = vmatprep.subr.mxu0 0.0
    %1813 = vmatpush1.msra.mxu0 0.0
    %1814 = vmatprep.subr.mxu0 0.0
    %1815 = vmatpush1.msra.mxu0 0.0
    %1816 = vmatprep.subr.mxu0 0.0
    %1817 = vmatpush1.msra.mxu0 0.0
    %1818 = vmatprep.subr.mxu0 0.0
    %1819 = vmatpush1.msra.mxu0 0.0
    %1820 = vmatprep.mubr.f32.mxu0 0.0
    %1821 = vmatmul.mubr.f32.gmra.mrb[0].mxu0 %v1754
    %v1822 = vpop.f32.mrb[0].mxu0
    %v1823 = vadd.f32 %v1750, %v1822
    %v1824 = vpop.f32.mrb[0].mxu0
    %1825 = vdwg.mxu0
    %v1826 = vmax.f32 %v1823, 0.0
    %vm1827 = vcmask 123904
    %1828 = vst.msk [vmem:[#allocation11] sm:$0x3] %vm1827, %v1826
    // Predicated region
    $region62: #{tpu_custom_call.1} parent=1 // pred_check
      _
    $region63: #{tpu_custom_call.1} parent=1 // pred_check_branch
      %1830 = sbr.rel (0) target = $region65
    $region64: #{tpu_custom_call.1} parent=1 // pred_region
      %s1832 = ssub.s32 32, 32
      %1833 = vsyncadd [#allocation4], %s1832
      %s1835 = sshll.u32 [#allocation11], 4
      %s1836 = int_to_ptr.vmem [resolvable:$true] %s1835
      %1838 = dma.vmem_to_hbm [thread:$0]  %s1836, 32, %s10, [#allocation4]
    $region65: #{tpu_custom_call.1} parent=1 // pred_fallthru
      _
    // Predicated region
    $region66: #{tpu_custom_call.1} parent=1 // pred_check
      _
    $region67: #{tpu_custom_call.1} parent=1 // pred_check_branch
      %1840 = sbr.rel (0) target = $region69
    $region68: #{tpu_custom_call.1} parent=1 // pred_region
      %s1842 = ssub.s32 256, 256
      %1843 = vsyncadd [#allocation13], %s1842
      %s1844 = sshll.u32 [#allocation12], 4
      %s1845 = int_to_ptr.vmem [resolvable:$true] %s1844
      %1850 = dma.vmem_to_hbm [thread:$0]  %s1845, 256, %s11, [#allocation13], 128, 128, 8
    $region69: #{tpu_custom_call.1} parent=1 // pred_fallthru
      _
    // Predicated region
    $region70: #{tpu_custom_call.1} parent=1 // pred_check
      _
    $region71: #{tpu_custom_call.1} parent=1 // pred_check_branch
      %1852 = sbr.rel (0) target = $region73
    $region72: #{tpu_custom_call.1} parent=1 // pred_region
      %1853 = dma.done [#allocation4], 32
    $region73: #{tpu_custom_call.1} parent=1 // pred_fallthru
      _
    // Predicated region
    $region74: #{tpu_custom_call.1} parent=1 // pred_check
      _
    $region75: #{tpu_custom_call.1} parent=1 // pred_check_branch
      %1855 = sbr.rel (0) target = $region77
    $region76: #{tpu_custom_call.1} parent=1 // pred_region
      %1856 = dma.done [#allocation13], 256
    $region77: #{tpu_custom_call.1} parent=1 // pred_fallthru
      _
    %1857 = vsyncpa [#allocation3], 1
    %1858 = vsyncpa [#allocation6], 1
    %1859 = vsyncpa [#allocation9], 1
    %1860 = vsyncpa [#allocation4], 1
    %1861 = vsyncpa [#allocation13], 1

</llo_original>
